<compile_context>
chip_gen: v7x
topology: tpu7x:2x2x1
jax: 0.10.0
libtpu: 0.0.40
codegen_flags: <defaults>
</compile_context>

<pallas_src>
import functools

import jax
import jax.numpy as jnp
from jax.experimental import pallas as pl
from jax.experimental.pallas import tpu as pltpu


def _pick_tile_h(H, W):
    """Largest divisor of H with tile_h * W <= 128 rows.

    Keeps the per-tile feat slab ~one MXU row-tile and the double-buffered
    input window well inside v7x's smaller VMEM (as well as v5e/v6e).
    """
    cap = max(1, 128 // max(W, 1))
    best = 1
    for th in range(1, H + 1):
        if H % th == 0 and th <= cap:
            best = th
    return best


def _torchvision_head_kernel(x_ref, conv_w_ref, conv_b_ref, fc_w_ref, fc_b_ref,
                             out_ref, acc_ref, *, tile_h, width, cin_p, inv_hw):
    """Per (batch, row-tile) step: conv-matmul -> ReLU -> pooled-sum accum.

    On the last row tile: mean, classifier matmul + bias, lane-dense store.
    """
    t = pl.program_id(1)

    @pl.when(t == 0)
    def _init():
        acc_ref[...] = jnp.zeros_like(acc_ref)

    # Input window for this tile: (tile_h + 2) padded rows, W+2 padded cols,
    # channels fused onto the lane axis.  bf16, no HBM im2col anywhere.
    win = x_ref[0, 0]                                  # (tile_h+2, (W+2)*cin_p)

    # Build the 3x3 patches in VMEM from 9 shifted slices (dy along sublanes,
    # dx along the fused lane axis), then one MXU matmul with K = 9*cin_p.
    taps = []
    for dy in range(3):
        for dx in range(3):
            sub = win[dy:dy + tile_h, dx * cin_p:(dx + width) * cin_p]
            taps.append(sub.reshape(tile_h, width, cin_p))
    patches = jnp.concatenate(taps, axis=-1).reshape(tile_h * width, 9 * cin_p)

    feat = jnp.dot(patches, conv_w_ref[...],
                   preferred_element_type=jnp.float32)   # (tile_h*W, Cf_pad) f32
    feat = jnp.maximum(feat + conv_b_ref[...], 0.0)      # bias + ReLU (f32)

    # AdaptiveAvgPool2d(1): accumulate the spatial sum for this tile.
    acc_ref[...] += jnp.sum(feat, axis=0, keepdims=True)

    @pl.when(t == pl.num_programs(1) - 1)
    def _finalize():
        pooled = acc_ref[...] * inv_hw                   # (1, Cf_pad), the mean
        out = jnp.dot(pooled, fc_w_ref[...],
                      preferred_element_type=jnp.float32) + fc_b_ref[...]
        out_ref[...] = out.reshape(out_ref.shape)        # lane-dense (128) store


def torchvision_model_forward(x_nchw, conv_w, conv_b, fc_w, fc_b):
    """Wrapper: NCHW -> NHWC + pad + per-tile halo rows (plain-JAX glue),
    then one tiled, pipelined Pallas kernel for conv+ReLU+pool+classifier."""
    B, Cin, H, W = x_nchw.shape
    KH = KW = 3
    Cf, num_out = fc_w.shape
    assert conv_w.shape == (KH * KW * Cin, Cf)

    LANE, SUB = 128, 8
    cin_p = ((Cin + SUB - 1) // SUB) * SUB          # pad contraction channels
    cf_p = ((Cf + LANE - 1) // LANE) * LANE         # lane-dense feature dim
    nout_p = ((num_out + LANE - 1) // LANE) * LANE  # lane-dense output store

    tile_h = _pick_tile_h(H, W)
    assert H % tile_h == 0
    T = H // tile_h

    # --- plain-JAX glue ----------------------------------------------------
    x = jnp.transpose(x_nchw, (0, 2, 3, 1)).astype(jnp.float32)       # (B,H,W,Cin)
    xp = jnp.pad(x, ((0, 0), (1, 1), (1, 1), (0, cin_p - Cin)))       # spatial+chan pad
    # Each row tile carries its own 2-row conv halo -> non-overlapping blocks,
    # only (2 / tile_h) duplicated rows instead of a 9x im2col matrix.
    row_idx = (jnp.arange(T)[:, None] * tile_h
               + jnp.arange(tile_h + 2)[None, :]).reshape(-1)
    xb = xp[:, row_idx].reshape(B, T, tile_h + 2, (W + 2) * cin_p)
    xb = xb.astype(jnp.bfloat16)                                      # MXU operand

    # Weights padded to MXU / lane-aligned shapes (zero padding is exact).
    cw = conv_w.reshape(KH * KW, Cin, Cf).astype(jnp.float32)
    cw = jnp.pad(cw, ((0, 0), (0, cin_p - Cin), (0, cf_p - Cf)))
    cw = cw.reshape(KH * KW * cin_p, cf_p).astype(jnp.bfloat16)       # MXU operand
    cb = jnp.pad(conv_b.astype(jnp.float32), (0, cf_p - Cf)).reshape(1, cf_p)
    fw = jnp.pad(fc_w.astype(jnp.float32),
                 ((0, cf_p - Cf), (0, nout_p - num_out)))
    fb = jnp.pad(fc_b.astype(jnp.float32), (0, nout_p - num_out)).reshape(1, nout_p)

    kernel = functools.partial(_torchvision_head_kernel,
                               tile_h=tile_h, width=W, cin_p=cin_p,
                               inv_hw=1.0 / float(H * W))

    out = pl.pallas_call(
        kernel,
        out_shape=jax.ShapeDtypeStruct((B, 1, nout_p), jnp.float32),
        grid=(B, T),
        in_specs=[
            # per-(batch, row-tile) image window, auto double-buffered
            pl.BlockSpec((1, 1, tile_h + 2, (W + 2) * cin_p),
                         lambda b, t: (b, t, 0, 0)),
            # weights/biases: resident in VMEM (constant block index -> no re-DMA)
            pl.BlockSpec((KH * KW * cin_p, cf_p), lambda b, t: (0, 0)),
            pl.BlockSpec((1, cf_p), lambda b, t: (0, 0)),
            pl.BlockSpec((cf_p, nout_p), lambda b, t: (0, 0)),
            pl.BlockSpec((1, nout_p), lambda b, t: (0, 0)),
        ],
        out_specs=pl.BlockSpec((1, 1, nout_p), lambda b, t: (b, 0, 0)),
        scratch_shapes=[pltpu.VMEM((1, cf_p), jnp.float32)],   # pooled-sum accum
        compiler_params=pltpu.CompilerParams(
            # batch axis shards across v7x's 2 TensorCores; row-tile axis is
            # the pooled-sum reduction.
            dimension_semantics=("parallel", "arbitrary"),
            # Working set here is a few hundred KiB; 16 MiB is explicit and
            # safe on every generation (v5e 16 / v6e 32 / v7x 32 MiB scoped).
            vmem_limit_bytes=16 * 1024 * 1024,
        ),
    )(xb, cw, cb, fw, fb)

    return out[:, 0, :num_out]


if __name__ == "__main__":
    # Small shapes consistent with the module's forward pass.
    B, Cin, H, W = 2, 4, 16, 16      # input image-like tensor (NCHW)
    Cf = 32                          # num_ftrs = model.classifier.in_features
    num_tasks = 5                    # len(task_sequence)
    num_outputs = num_tasks          # model_uncertainty=False, frontal_lateral=False

    key = jax.random.PRNGKey(0)
    k_x, k_cw, k_cb, k_fw, k_fb = jax.random.split(key, 5)

    x = jax.random.normal(k_x, (B, Cin, H, W), dtype=jnp.float32)

    # Synthetic "features" conv weights: (KH*KW*Cin, Cf), patch order (dy, dx, Cin).
    conv_w = jax.random.normal(k_cw, (3 * 3 * Cin, Cf), dtype=jnp.float32) * 0.1
    conv_b = jax.random.normal(k_cb, (Cf,), dtype=jnp.float32) * 0.1

    # Classifier nn.Linear(num_ftrs, num_outputs), stored as (Cf, num_outputs).
    fc_w = jax.random.normal(k_fw, (Cf, num_outputs), dtype=jnp.float32) * 0.1
    fc_b = jax.random.normal(k_fb, (num_outputs,), dtype=jnp.float32) * 0.1

    fwd = jax.jit(torchvision_model_forward)
    out = fwd(x, conv_w, conv_b, fc_w, fc_b)
    out = jax.block_until_ready(out)
    assert out.shape == (B, num_outputs), out.shape

    # Pure-JAX f32 reference (tolerance covers bf16 conv operands in-kernel).
    xt = jnp.transpose(x, (0, 2, 3, 1))
    xp = jnp.pad(xt, ((0, 0), (1, 1), (1, 1), (0, 0)))
    plist = [xp[:, dy:dy + H, dx:dx + W, :] for dy in range(3) for dx in range(3)]
    pat = jnp.concatenate(plist, axis=-1).reshape(B * H * W, -1)
    feat_ref = jnp.maximum(pat @ conv_w + conv_b, 0.0).reshape(B, H * W, Cf)
    ref = feat_ref.mean(axis=1) @ fc_w + fc_b
    assert jnp.allclose(out, ref, atol=2e-2, rtol=2e-2), jnp.max(jnp.abs(out - ref))

    print("KERNEL_OK")
</pallas_src>

<mosaic_0001>
module attributes {stable_mosaic.version = 11 : i64} {
  func.func @_torchvision_head_kernel(%arg0: i32, %arg1: i32, %arg2: memref<1x1x10x144xbf16, #tpu.memory_space<vmem>>, %arg3: memref<72x128xbf16, #tpu.memory_space<vmem>>, %arg4: memref<1x128xf32, #tpu.memory_space<vmem>>, %arg5: memref<128x128xf32, #tpu.memory_space<vmem>>, %arg6: memref<1x128xf32, #tpu.memory_space<vmem>>, %arg7: memref<1x1x128xf32, #tpu.memory_space<vmem>>, %arg8: memref<1x128xf32, #tpu.memory_space<vmem>>) attributes {dimension_semantics = [#tpu.dimension_semantics<parallel>, #tpu.dimension_semantics<arbitrary>], iteration_bounds = array<i64: 2, 2>, scalar_prefetch = 0 : i64, scratch_operands = 1 : i64, tpu.core_type = #tpu.core_type<tc>, window_params = [{transform_indices = @transform_0, window_bounds = array<i64: 1, 1, 10, 144>}, {pipeline_mode = #tpu.pipeline_mode<synchronous>, transform_indices = @transform_1, window_bounds = array<i64: 72, 128>}, {pipeline_mode = #tpu.pipeline_mode<synchronous>, transform_indices = @transform_2, window_bounds = array<i64: 1, 128>}, {pipeline_mode = #tpu.pipeline_mode<synchronous>, transform_indices = @transform_3, window_bounds = array<i64: 128, 128>}, {pipeline_mode = #tpu.pipeline_mode<synchronous>, transform_indices = @transform_4, window_bounds = array<i64: 1, 128>}, {transform_indices = @transform_5, window_bounds = array<i64: 1, 1, 128>}]} {
    %c0_i32 = arith.constant 0 : i32
    %0 = arith.cmpi eq, %arg1, %c0_i32 : i32
    %1 = arith.extui %0 : i1 to i32
    %c0_i32_0 = arith.constant 0 : i32
    %2 = arith.cmpi ne, %1, %c0_i32_0 : i32
    scf.if %2 {
      %cst_15 = arith.constant 0.000000e+00 : f32
      %40 = vector.broadcast %cst_15 : f32 to vector<1x128xf32>
      %c0_16 = arith.constant 0 : index
      %c0_17 = arith.constant 0 : index
      %41 = vector.load %arg8[%c0_16, %c0_17] : memref<1x128xf32, #tpu.memory_space<vmem>>, vector<1x128xf32>
      tpu.vector_store %arg8[%c0_16, %c0_17], %40 {strides = array<i32>} : memref<1x128xf32, #tpu.memory_space<vmem>>, vector<1x128xf32>,
    } else {
    }
    %c0 = arith.constant 0 : index
    %c0_1 = arith.constant 0 : index
    %c0_2 = arith.constant 0 : index
    %c0_3 = arith.constant 0 : index
    %3 = vector.load %arg2[%c0, %c0_1, %c0_2, %c0_3] : memref<1x1x10x144xbf16, #tpu.memory_space<vmem>>, vector<1x1x10x144xbf16>
    %4 = vector.shape_cast %3 : vector<1x1x10x144xbf16> to vector<10x144xbf16>
    %5 = vector.extract_strided_slice %4 {offsets = [0, 0], sizes = [8, 128], strides = [1, 1]} : vector<10x144xbf16> to vector<8x128xbf16>
    %6 = vector.shape_cast %5 : vector<8x128xbf16> to vector<8x16x8xbf16>
    %7 = vector.extract_strided_slice %4 {offsets = [0, 8], sizes = [8, 128], strides = [1, 1]} : vector<10x144xbf16> to vector<8x128xbf16>
    %8 = vector.shape_cast %7 : vector<8x128xbf16> to vector<8x16x8xbf16>
    %9 = vector.extract_strided_slice %4 {offsets = [0, 16], sizes = [8, 128], strides = [1, 1]} : vector<10x144xbf16> to vector<8x128xbf16>
    %10 = vector.shape_cast %9 : vector<8x128xbf16> to vector<8x16x8xbf16>
    %11 = vector.extract_strided_slice %4 {offsets = [1, 0], sizes = [8, 128], strides = [1, 1]} : vector<10x144xbf16> to vector<8x128xbf16>
    %12 = vector.shape_cast %11 : vector<8x128xbf16> to vector<8x16x8xbf16>
    %13 = vector.extract_strided_slice %4 {offsets = [1, 8], sizes = [8, 128], strides = [1, 1]} : vector<10x144xbf16> to vector<8x128xbf16>
    %14 = vector.shape_cast %13 : vector<8x128xbf16> to vector<8x16x8xbf16>
    %15 = vector.extract_strided_slice %4 {offsets = [1, 16], sizes = [8, 128], strides = [1, 1]} : vector<10x144xbf16> to vector<8x128xbf16>
    %16 = vector.shape_cast %15 : vector<8x128xbf16> to vector<8x16x8xbf16>
    %17 = vector.extract_strided_slice %4 {offsets = [2, 0], sizes = [8, 128], strides = [1, 1]} : vector<10x144xbf16> to vector<8x128xbf16>
    %18 = vector.shape_cast %17 : vector<8x128xbf16> to vector<8x16x8xbf16>
    %19 = vector.extract_strided_slice %4 {offsets = [2, 8], sizes = [8, 128], strides = [1, 1]} : vector<10x144xbf16> to vector<8x128xbf16>
    %20 = vector.shape_cast %19 : vector<8x128xbf16> to vector<8x16x8xbf16>
    %21 = vector.extract_strided_slice %4 {offsets = [2, 16], sizes = [8, 128], strides = [1, 1]} : vector<10x144xbf16> to vector<8x128xbf16>
    %22 = vector.shape_cast %21 : vector<8x128xbf16> to vector<8x16x8xbf16>
    %23 = tpu.concatenate %6, %8, %10, %12, %14, %16, %18, %20, %22 in 2 : vector<8x16x8xbf16>, vector<8x16x8xbf16>, vector<8x16x8xbf16>, vector<8x16x8xbf16>, vector<8x16x8xbf16>, vector<8x16x8xbf16>, vector<8x16x8xbf16>, vector<8x16x8xbf16>, vector<8x16x8xbf16> -> vector<8x16x72xbf16>
    %24 = vector.shape_cast %23 : vector<8x16x72xbf16> to vector<128x72xbf16>
    %c0_4 = arith.constant 0 : index
    %c0_5 = arith.constant 0 : index
    %25 = vector.load %arg3[%c0_4, %c0_5] : memref<72x128xbf16, #tpu.memory_space<vmem>>, vector<72x128xbf16>
    %cst = arith.constant dense<0.000000e+00> : vector<128x128xf32>
    %26 = tpu.matmul %24, %25, %cst {dimension_numbers = #tpu.dot_dimension_numbers<[1], [0], [0], [1], [0, 0, 1, 1], [], []>} : vector<128x72xbf16>, vector<72x128xbf16>, vector<128x128xf32> -> vector<128x128xf32>
    %c0_6 = arith.constant 0 : index
    %c0_7 = arith.constant 0 : index
    %27 = vector.load %arg4[%c0_6, %c0_7] : memref<1x128xf32, #tpu.memory_space<vmem>>, vector<1x128xf32>
    %28 = vector.broadcast %27 : vector<1x128xf32> to vector<128x128xf32>
    %29 = arith.addf %26, %28 : vector<128x128xf32>
    %cst_8 = arith.constant 0.000000e+00 : f32
    %30 = vector.broadcast %cst_8 : f32 to vector<128x128xf32>
    %31 = arith.maximumf %29, %30 : vector<128x128xf32>
    %c0_9 = arith.constant 0 : index
    %c0_10 = arith.constant 0 : index
    %32 = vector.load %arg8[%c0_9, %c0_10] : memref<1x128xf32, #tpu.memory_space<vmem>>, vector<1x128xf32>
    %cst_11 = arith.constant dense<0.000000e+00> : vector<128xf32>
    %33 = vector.multi_reduction <add>, %31, %cst_11 [0] : vector<128x128xf32> to vector<128xf32>
    %34 = vector.shape_cast %33 : vector<128xf32> to vector<1x128xf32>
    %35 = arith.addf %32, %34 : vector<1x128xf32>
    %c0_12 = arith.constant 0 : index
    %c0_13 = arith.constant 0 : index
    %36 = vector.load %arg8[%c0_12, %c0_13] : memref<1x128xf32, #tpu.memory_space<vmem>>, vector<1x128xf32>
    tpu.vector_store %arg8[%c0_12, %c0_13], %35 {strides = array<i32>} : memref<1x128xf32, #tpu.memory_space<vmem>>, vector<1x128xf32>,
    %c1_i32 = arith.constant 1 : i32
    %37 = arith.cmpi eq, %arg1, %c1_i32 : i32
    %38 = arith.extui %37 : i1 to i32
    %c0_i32_14 = arith.constant 0 : i32
    %39 = arith.cmpi ne, %38, %c0_i32_14 : i32
    scf.if %39 {
      %c0_15 = arith.constant 0 : index
      %c0_16 = arith.constant 0 : index
      %40 = vector.load %arg8[%c0_15, %c0_16] : memref<1x128xf32, #tpu.memory_space<vmem>>, vector<1x128xf32>
      %cst_17 = arith.constant 3.906250e-03 : f32
      %41 = vector.broadcast %cst_17 : f32 to vector<1x128xf32>
      %42 = arith.mulf %40, %41 : vector<1x128xf32>
      %c0_18 = arith.constant 0 : index
      %c0_19 = arith.constant 0 : index
      %43 = vector.load %arg5[%c0_18, %c0_19] : memref<128x128xf32, #tpu.memory_space<vmem>>, vector<128x128xf32>
      %cst_20 = arith.constant dense<0.000000e+00> : vector<1x128xf32>
      %44 = tpu.matmul %42, %43, %cst_20 {dimension_numbers = #tpu.dot_dimension_numbers<[1], [0], [0], [1], [0, 0, 1, 1], [], []>} : vector<1x128xf32>, vector<128x128xf32>, vector<1x128xf32> -> vector<1x128xf32>
      %c0_21 = arith.constant 0 : index
      %c0_22 = arith.constant 0 : index
      %45 = vector.load %arg6[%c0_21, %c0_22] : memref<1x128xf32, #tpu.memory_space<vmem>>, vector<1x128xf32>
      %46 = arith.addf %44, %45 : vector<1x128xf32>
      %47 = vector.shape_cast %46 : vector<1x128xf32> to vector<1x1x128xf32>
      %c0_23 = arith.constant 0 : index
      %c0_24 = arith.constant 0 : index
      %c0_25 = arith.constant 0 : index
      %48 = vector.load %arg7[%c0_23, %c0_24, %c0_25] : memref<1x1x128xf32, #tpu.memory_space<vmem>>, vector<1x1x128xf32>
      tpu.vector_store %arg7[%c0_23, %c0_24, %c0_25], %47 {strides = array<i32>} : memref<1x1x128xf32, #tpu.memory_space<vmem>>, vector<1x1x128xf32>,
    } else {
    }
    return
  }
  func.func @transform_0(%arg0: i32, %arg1: i32) -> (i32, i32, i32, i32) {
    %c0_i32 = arith.constant 0 : i32
    %c0_i32_0 = arith.constant 0 : i32
    %c0_i32_1 = arith.constant 0 : i32
    return %arg0, %arg1, %c0_i32, %c0_i32_0 : i32, i32, i32, i32
  }
  func.func @transform_1(%arg0: i32, %arg1: i32) -> (i32, i32) {
    %c0_i32 = arith.constant 0 : i32
    %c0_i32_0 = arith.constant 0 : i32
    %c0_i32_1 = arith.constant 0 : i32
    return %c0_i32, %c0_i32_0 : i32, i32
  }
  func.func @transform_2(%arg0: i32, %arg1: i32) -> (i32, i32) {
    %c0_i32 = arith.constant 0 : i32
    %c0_i32_0 = arith.constant 0 : i32
    %c0_i32_1 = arith.constant 0 : i32
    return %c0_i32, %c0_i32_0 : i32, i32
  }
  func.func @transform_3(%arg0: i32, %arg1: i32) -> (i32, i32) {
    %c0_i32 = arith.constant 0 : i32
    %c0_i32_0 = arith.constant 0 : i32
    %c0_i32_1 = arith.constant 0 : i32
    return %c0_i32, %c0_i32_0 : i32, i32
  }
  func.func @transform_4(%arg0: i32, %arg1: i32) -> (i32, i32) {
    %c0_i32 = arith.constant 0 : i32
    %c0_i32_0 = arith.constant 0 : i32
    %c0_i32_1 = arith.constant 0 : i32
    return %c0_i32, %c0_i32_0 : i32, i32
  }
  func.func @transform_5(%arg0: i32, %arg1: i32) -> (i32, i32, i32) {
    %c0_i32 = arith.constant 0 : i32
    %c0_i32_0 = arith.constant 0 : i32
    %c0_i32_1 = arith.constant 0 : i32
    return %arg0, %c0_i32, %c0_i32_0 : i32, i32, i32
  }
}

</mosaic_0001>

<llo_original>
// kernel: torchvision_model_forward.1
$region0: #{torchvision_model_forward.1}
  #allocation0 [shape = 'u32[]', space=smem, size = 0x4, offset = 0x4, fixed_abs, tag = 'smem constant byte address 0x4 - core index']
  #allocation1 [shape = 'u32[144,128]{1,0:T(1,128)}', space=vmem, size = 0x12000, scoped, tag = 'internal scratch']
  #allocation2 [shape = 'f32[1,128]{1,0:T(1,128)}', space=vmem, size = 0x200, scoped, tag = 'scratch operand']
  %s0 = inlined_call_operand.vmem [shape: bf16[2,2,10,144], index: 0, kind: input, shape index: {}]
  %s1 = inlined_call_operand.vmem [shape: bf16[72,128], index: 1, kind: input, shape index: {}]
  %s2 = inlined_call_operand.vmem [shape: f32[1,128], index: 2, kind: input, shape index: {}]
  %s3 = inlined_call_operand.vmem [shape: f32[128,128], index: 3, kind: input, shape index: {}]
  %s4 = inlined_call_operand.vmem [shape: f32[1,128], index: 4, kind: input, shape index: {}]
  %s5 = inlined_call_operand.hbm [shape: f32[2,1,128], index: 5, kind: output, shape index: {}]
  %s6 = sld [smem:[#allocation0]]
  $region61: #{torchvision_model_forward.1} parent=0
    _
  %s8 = ssub.s32 1, %s6
  %s9 = scalar_select 0, %s8, %s6
  $region1: #{torchvision_model_forward.1} parent=0
    #allocation3 [shape = 'u8[1024]{0}', space=vmem, size = 0x400, scoped, tag = 'output window, operand 0']
    #allocation4 [shape = 's32[2]{0}', space=sflag, size = 0x8, scoped, tag = 'scoped memory for torchvision_model_forward.1']
    %10 = vsyncpa [#allocation4], 0
    %s11 = scalar_lea.sflag [#allocation4], 1
    %12 = vsyncpa %s11, 0
    loop: start=0, step=1, limit=6
    $region2: #{torchvision_model_forward.1} parent=1 // loop_pre_header
      _
    $region3: #{torchvision_model_forward.1} parent=1 // loop_header
      %s14 = sphi 0, %s18
      %p15 = scmp.ge.s32.totalorder %s14, 6
      %s21 = sphi 0, %s33
      %s22 = sphi 0, %s29
      %s23 = sphi 0, %s21
      %s24 = sphi 0, %s22
      %s25 = sphi 0, %s23
      %s26 = sphi 0, %s24
      %s38 = sphi 0, %s40
      %s41 = sphi 0, %s38
      %s42 = sphi 0, %s41
      %s58 = sphi 0, %s42
      %s62 = sphi 0, %s62
      %s64 = sphi 0, %s62
      %s65 = sphi 0, %s64
      %s79 = sphi 0, %s65
      %s83 = sphi 0, %s83
      %s85 = sphi 0, %s83
      %s86 = sphi 0, %s85
      %s100 = sphi 0, %s86
      %s104 = sphi 0, %s104
      %s106 = sphi 0, %s104
      %s107 = sphi 0, %s106
      %s121 = sphi 0, %s107
      %s125 = sphi 0, %s125
      %s127 = sphi 0, %s125
      %s128 = sphi 0, %s127
      %s142 = sphi 0, %s128
      %s148 = sphi 0, %s150
      %s151 = sphi 0, %s148
      %s152 = sphi 0, %s151
      %s168 = sphi 0, %s152
    $region4: #{torchvision_model_forward.1} parent=1 // loop_header_branch
      %17 = sbr.rel (%p15) target = $region8
    $region5: #{torchvision_model_forward.1} parent=1 // loop_body
      %s19 = ssub.s32 %s14, 1
      %s20 = ssub.s32 %s14, 2
      %s27 = sadd.s32 1, %s22
      %p28 = scmp.ge.s32.totalorder %s27, 2
      %s29 = scalar_select %p28, 0, %s27
      %s30 = sadd.s32 1, %s21
      %s31 = scalar_select %p28, %s30, %s21
      %p32 = scmp.ge.s32.totalorder %s31, 2
      %s33 = scalar_select %p32, 0, %s31
      %s34 = ssub.s32 %s21, %s33
      %s35 = ssub.s32 %s22, %s29
      %s36 = sor.u32 %s34, %s35
      %p37 = scmp.eq.s32.totalorder %s36, 0
      %s39 = sadd.s32 %s38, 1
      %s40 = scalar_select %p37, %s38, %s39
      %p43 = pneg %p37
      %p44 = scmp.eq.s32.totalorder %s14, 3
      %p45 = por %p43, %p44
      %p46 = scmp.ne.s32.totalorder %s38, %s41
      %p47 = scmp.eq.s32.totalorder %s14, 0
      %p48 = por %p46, %p47
      %p49 = scmp.ne.s32.totalorder %s38, %s41
      %p50 = scmp.eq.s32.totalorder %s19, 3
      %p51 = por %p49, %p50
      %p52 = scmp.ne.s32.totalorder %s41, %s42
      %p53 = scmp.eq.s32.totalorder %s19, 0
      %p54 = por %p52, %p53
      %p55 = scmp.ne.s32.totalorder %s41, %s42
      %p56 = scmp.eq.s32.totalorder %s20, 3
      %p57 = por %p55, %p56
      %p59 = scmp.ne.s32.totalorder %s42, %s58
      %p60 = scmp.eq.s32.totalorder %s20, 0
      %p61 = por %p59, %p60
      %s63 = sadd.s32 %s62, 1
      %p66 = scmp.eq.s32.totalorder %s14, 3
      %p67 = scmp.ne.s32.totalorder %s62, %s64
      %p68 = scmp.eq.s32.totalorder %s14, 0
      %p69 = por %p67, %p68
      %p70 = scmp.ne.s32.totalorder %s62, %s64
      %p71 = scmp.eq.s32.totalorder %s19, 3
      %p72 = por %p70, %p71
      %p73 = scmp.ne.s32.totalorder %s64, %s65
      %p74 = scmp.eq.s32.totalorder %s19, 0
      %p75 = por %p73, %p74
      %p76 = scmp.ne.s32.totalorder %s64, %s65
      %p77 = scmp.eq.s32.totalorder %s20, 3
      %p78 = por %p76, %p77
      %p80 = scmp.ne.s32.totalorder %s65, %s79
      %p81 = scmp.eq.s32.totalorder %s20, 0
      %p82 = por %p80, %p81
      %s84 = sadd.s32 %s83, 1
      %p87 = scmp.eq.s32.totalorder %s14, 3
      %p88 = scmp.ne.s32.totalorder %s83, %s85
      %p89 = scmp.eq.s32.totalorder %s14, 0
      %p90 = por %p88, %p89
      %p91 = scmp.ne.s32.totalorder %s83, %s85
      %p92 = scmp.eq.s32.totalorder %s19, 3
      %p93 = por %p91, %p92
      %p94 = scmp.ne.s32.totalorder %s85, %s86
      %p95 = scmp.eq.s32.totalorder %s19, 0
      %p96 = por %p94, %p95
      %p97 = scmp.ne.s32.totalorder %s85, %s86
      %p98 = scmp.eq.s32.totalorder %s20, 3
      %p99 = por %p97, %p98
      %p101 = scmp.ne.s32.totalorder %s86, %s100
      %p102 = scmp.eq.s32.totalorder %s20, 0
      %p103 = por %p101, %p102
      %s105 = sadd.s32 %s104, 1
      %p108 = scmp.eq.s32.totalorder %s14, 3
      %p109 = scmp.ne.s32.totalorder %s104, %s106
      %p110 = scmp.eq.s32.totalorder %s14, 0
      %p111 = por %p109, %p110
      %p112 = scmp.ne.s32.totalorder %s104, %s106
      %p113 = scmp.eq.s32.totalorder %s19, 3
      %p114 = por %p112, %p113
      %p115 = scmp.ne.s32.totalorder %s106, %s107
      %p116 = scmp.eq.s32.totalorder %s19, 0
      %p117 = por %p115, %p116
      %p118 = scmp.ne.s32.totalorder %s106, %s107
      %p119 = scmp.eq.s32.totalorder %s20, 3
      %p120 = por %p118, %p119
      %p122 = scmp.ne.s32.totalorder %s107, %s121
      %p123 = scmp.eq.s32.totalorder %s20, 0
      %p124 = por %p122, %p123
      %s126 = sadd.s32 %s125, 1
      %p129 = scmp.eq.s32.totalorder %s14, 3
      %p130 = scmp.ne.s32.totalorder %s125, %s127
      %p131 = scmp.eq.s32.totalorder %s14, 0
      %p132 = por %p130, %p131
      %p133 = scmp.ne.s32.totalorder %s125, %s127
      %p134 = scmp.eq.s32.totalorder %s19, 3
      %p135 = por %p133, %p134
      %p136 = scmp.ne.s32.totalorder %s127, %s128
      %p137 = scmp.eq.s32.totalorder %s19, 0
      %p138 = por %p136, %p137
      %p139 = scmp.ne.s32.totalorder %s127, %s128
      %p140 = scmp.eq.s32.totalorder %s20, 3
      %p141 = por %p139, %p140
      %p143 = scmp.ne.s32.totalorder %s128, %s142
      %p144 = scmp.eq.s32.totalorder %s20, 0
      %p145 = por %p143, %p144
      %s146 = ssub.s32 %s21, %s33
      %p147 = scmp.eq.s32.totalorder %s146, 0
      %s149 = sadd.s32 %s148, 1
      %s150 = scalar_select %p147, %s148, %s149
      %p153 = pneg %p147
      %p154 = scmp.eq.s32.totalorder %s14, 3
      %p155 = por %p153, %p154
      %p156 = scmp.ne.s32.totalorder %s148, %s151
      %p157 = scmp.eq.s32.totalorder %s14, 0
      %p158 = por %p156, %p157
      %p159 = scmp.ne.s32.totalorder %s148, %s151
      %p160 = scmp.eq.s32.totalorder %s19, 3
      %p161 = por %p159, %p160
      %p162 = scmp.ne.s32.totalorder %s151, %s152
      %p163 = scmp.eq.s32.totalorder %s19, 0
      %p164 = por %p162, %p163
      %p165 = scmp.ne.s32.totalorder %s151, %s152
      %p166 = scmp.eq.s32.totalorder %s20, 3
      %p167 = por %p165, %p166
      %p169 = scmp.ne.s32.totalorder %s152, %s168
      %p170 = scmp.eq.s32.totalorder %s20, 0
      %p171 = por %p169, %p170
      %p172 = scmp.le.s32.totalorder 1, %s14
      %p173 = scmp.lt.s32.totalorder %s14, 5
      %p174 = pnand %p172, %p173
      %p175 = pneg %p174
      // Predicated region
      $region9: #{torchvision_model_forward.1} parent=5 // pred_check
        _
      $region10: #{torchvision_model_forward.1} parent=5 // pred_check_branch
        %177 = sbr.rel (%p174) target = $region12
      $region11: #{torchvision_model_forward.1} parent=5 // pred_region
        %s178 = ssub.s32 %s14, 1
        // Predicated region
        $region13: #{torchvision_model_forward.1} parent=11 // pred_check
          %p179 = pneg %p75
        $region14: #{torchvision_model_forward.1} parent=11 // pred_check_branch
          %181 = sbr.rel (%p179) target = $region16
        $region15: #{torchvision_model_forward.1} parent=11 // pred_region
          _
        $region16: #{torchvision_model_forward.1} parent=11 // pred_fallthru
          _
        // Predicated region
        $region17: #{torchvision_model_forward.1} parent=11 // pred_check
          %p182 = pneg %p96
        $region18: #{torchvision_model_forward.1} parent=11 // pred_check_branch
          %184 = sbr.rel (%p182) target = $region20
        $region19: #{torchvision_model_forward.1} parent=11 // pred_region
          _
        $region20: #{torchvision_model_forward.1} parent=11 // pred_fallthru
          _
        // Predicated region
        $region21: #{torchvision_model_forward.1} parent=11 // pred_check
          %p185 = pneg %p117
        $region22: #{torchvision_model_forward.1} parent=11 // pred_check_branch
          %187 = sbr.rel (%p185) target = $region24
        $region23: #{torchvision_model_forward.1} parent=11 // pred_region
          _
        $region24: #{torchvision_model_forward.1} parent=11 // pred_fallthru
          _
        // Predicated region
        $region25: #{torchvision_model_forward.1} parent=11 // pred_check
          %p188 = pneg %p138
        $region26: #{torchvision_model_forward.1} parent=11 // pred_check_branch
          %190 = sbr.rel (%p188) target = $region28
        $region27: #{torchvision_model_forward.1} parent=11 // pred_region
          _
        $region28: #{torchvision_model_forward.1} parent=11 // pred_fallthru
          _
      $region12: #{torchvision_model_forward.1} parent=5 // pred_fallthru
        _
      %p191 = scmp.lt.s32.totalorder %s14, 4
      // Predicated region
      $region29: #{torchvision_model_forward.1} parent=5 // pred_check
        %p192 = pneg %p191
      $region30: #{torchvision_model_forward.1} parent=5 // pred_check_branch
        %194 = sbr.rel (%p192) target = $region32
      $region31: #{torchvision_model_forward.1} parent=5 // pred_region
        // Predicated region
        $region33: #{torchvision_model_forward.1} parent=31 // pred_check
          %p195 = pneg %p48
        $region34: #{torchvision_model_forward.1} parent=31 // pred_check_branch
          %197 = sbr.rel (%p195) target = $region36
        $region35: #{torchvision_model_forward.1} parent=31 // pred_region
          %p198 = scmp.lt.s32.totalorder %s21, 1
          %s199 = scalar_select %p198, %s21, 1
          %p200 = scmp.lt.s32.totalorder %s22, 1
          %s201 = scalar_select %p200, %s22, 1
          %s202 = smul.addr %s201, 4
          %s203 = smul.addr %s199, 8
          %s204 = sadd.s32 %s202, %s203
          %s205 = smul.addr %s204, 4
          %s206 = scalar_lea.vmem %s0, %s205
        $region36: #{torchvision_model_forward.1} parent=31 // pred_fallthru
          _
      $region32: #{torchvision_model_forward.1} parent=5 // pred_fallthru
        _
      %p207 = scmp.le.s32.totalorder 1, %s14
      %p208 = scmp.lt.s32.totalorder %s14, 5
      %p209 = pnand %p207, %p208
      %p210 = pneg %p209
      // Predicated region
      $region37: #{torchvision_model_forward.1} parent=5 // pred_check
        _
      $region38: #{torchvision_model_forward.1} parent=5 // pred_check_branch
        %212 = sbr.rel (%p209) target = $region40
      $region39: #{torchvision_model_forward.1} parent=5 // pred_region
        %s213 = ssub.s32 %s14, 1
        %p214 = scmp.lt.s32.totalorder %s23, 1
        %s215 = scalar_select %p214, %s23, 1
        %p216 = scmp.lt.s32.totalorder %s24, 1
        %s217 = scalar_select %p216, %s24, 1
        %s218 = smul.addr %s217, 4
        %s219 = smul.addr %s215, 8
        %s220 = sadd.s32 %s218, %s219
        %s221 = smul.addr %s220, 4
        %s222 = scalar_lea.vmem %s0, %s221
        %p223 = pneg %p54
        %p224 = pneg %p51
        %p225 = pneg %p75
        %p226 = pneg %p72
        %p227 = pneg %p96
        %p228 = pneg %p93
        %p229 = pneg %p117
        %p230 = pneg %p114
        %p231 = pneg %p138
        %p232 = pneg %p135
        %p233 = pneg %p164
        %p234 = pneg %p161
        %s235 = sand.u32 %s151, 1
        %s236 = scalar_lea.sflag [#allocation4], %s235
        %s237 = sand.u32 %s151, 1
        %s238 = scalar_lea.vmem [#allocation3], %s237
        %p239 = scmp.lt.s32.totalorder %s23, 1
        %s240 = scalar_select %p239, %s23, 1
        %p241 = scmp.lt.s32.totalorder %s24, 1
        %s242 = scalar_select %p241, %s24, 1
        %s243 = smul.addr %s242, 4
        %s244 = smul.addr %s240, 8
        %s245 = sadd.s32 %s243, %s244
        %s246 = smul.addr %s245, 4
        %s247 = scalar_lea.vmem %s0, %s246
        %p249 = scmp.eq.s32.totalorder %s24, 0
        // Predicated region
        $region41: #{torchvision_model_forward.1} parent=39 // pred_check
          %p250 = pneg %p249
        $region42: #{torchvision_model_forward.1} parent=39 // pred_check_branch
          %252 = sbr.rel (%p250) target = $region44
        $region43: #{torchvision_model_forward.1} parent=39 // pred_region
          %253 = vst [vmem:[#allocation2] sm:$0x1] 0.0
        $region44: #{torchvision_model_forward.1} parent=39 // pred_fallthru
          _
        %v254 = vld [vmem:[%s247] sm:$0xff]
        %v255 = vld [vmem:[%s247 + $0x8] sm:$0x11]
        %257 = vrot.lane.b32.xlu0 %v254, 120
        %v258 = vpop.permute.xlu0 %257
        %260 = vrot.lane.b32.xlu0 %v254, 112
        %v261 = vpop.permute.xlu0 %260
        %263 = vrot.lane.b32.xlu0 %v254, 104
        %v264 = vpop.permute.xlu0 %263
        %266 = vrot.lane.b32.xlu0 %v254, 96
        %v267 = vpop.permute.xlu0 %266
        %269 = vrot.lane.b32.xlu0 %v254, 88
        %v270 = vpop.permute.xlu0 %269
        %272 = vrot.lane.b32.xlu0 %v254, 80
        %v273 = vpop.permute.xlu0 %272
        %275 = vrot.lane.b32.xlu0 %v254, 72
        %v276 = vpop.permute.xlu0 %275
        %278 = vrot.lane.b32.xlu0 %v254, 64
        %v279 = vpop.permute.xlu0 %278
        %281 = vrot.lane.b32.xlu0 %v254, 56
        %v282 = vpop.permute.xlu0 %281
        %284 = vrot.lane.b32.xlu0 %v254, 48
        %v285 = vpop.permute.xlu0 %284
        %287 = vrot.lane.b32.xlu0 %v254, 40
        %v288 = vpop.permute.xlu0 %287
        %290 = vrot.lane.b32.xlu0 %v254, 32
        %v291 = vpop.permute.xlu0 %290
        %293 = vrot.lane.b32.xlu0 %v254, 24
        %v294 = vpop.permute.xlu0 %293
        %296 = vrot.lane.b32.xlu0 %v254, 16
        %v297 = vpop.permute.xlu0 %296
        %299 = vrot.lane.b32.xlu0 %v254, 8
        %v300 = vpop.permute.xlu0 %299
        %v302 = vcombine.low %v254, %v267
        %v304 = vunpack.c.l.s4 1983009808
        %v305 = vunpack.c.0.s8 %v304
        %v306 = vlaneseq
        %v307 = vshrl.u32 %v306, 7
        %v308 = vsub.s32 %v305, %v307
        %v309 = vrot.slane %v302, %v308
        %v310 = vcombine.low %v261, %v273
        %v312 = vunpack.c.l.s4 1983009808
        %v313 = vunpack.c.0.s8 %v312
        %v314 = vlaneseq
        %v315 = vshrl.u32 %v314, 7
        %v316 = vsub.s32 %v313, %v315
        %v317 = vrot.slane %v310, %v316
        %v318 = vcombine.low %v309, %v317
        %v319 = vcombine.high %v309, %v317
        %v321 = vunpack.c.l.s4 1934713408
        %v322 = vunpack.c.0.s8 %v321
        %v323 = vlaneseq
        %v324 = vshrl.u32 %v323, 7
        %v325 = vsub.s32 %v322, %v324
        %v326 = vrot.slane %v318, %v325
        %v328 = vunpack.c.l.s4 1934713408
        %v329 = vunpack.c.0.s8 %v328
        %v330 = vlaneseq
        %v331 = vshrl.u32 %v330, 7
        %v332 = vsub.s32 %v329, %v331
        %v333 = vrot.slane %v319, %v332
        %v334 = vcombine.high %v326, 0
        %v335 = vcombine.high %v333, 0
        %v336 = vcombine.low %v258, %v270
        %v338 = vunpack.c.l.s4 1983009808
        %v339 = vunpack.c.0.s8 %v338
        %v340 = vlaneseq
        %v341 = vshrl.u32 %v340, 7
        %v342 = vsub.s32 %v339, %v341
        %v343 = vrot.slane %v336, %v342
        %v344 = vcombine.low %v264, %v276
        %v346 = vunpack.c.l.s4 1983009808
        %v347 = vunpack.c.0.s8 %v346
        %v348 = vlaneseq
        %v349 = vshrl.u32 %v348, 7
        %v350 = vsub.s32 %v347, %v349
        %v351 = vrot.slane %v344, %v350
        %v352 = vcombine.low %v343, %v351
        %v353 = vcombine.high %v343, %v351
        %v355 = vunpack.c.l.s4 1934713408
        %v356 = vunpack.c.0.s8 %v355
        %v357 = vlaneseq
        %v358 = vshrl.u32 %v357, 7
        %v359 = vsub.s32 %v356, %v358
        %v360 = vrot.slane %v352, %v359
        %v362 = vunpack.c.l.s4 1934713408
        %v363 = vunpack.c.0.s8 %v362
        %v364 = vlaneseq
        %v365 = vshrl.u32 %v364, 7
        %v366 = vsub.s32 %v363, %v365
        %v367 = vrot.slane %v353, %v366
        %v368 = vcombine.high %v360, 0
        %v369 = vcombine.high %v367, 0
        %v370 = vcombine.low %v279, %v291
        %v372 = vunpack.c.l.s4 1983009808
        %v373 = vunpack.c.0.s8 %v372
        %v374 = vlaneseq
        %v375 = vshrl.u32 %v374, 7
        %v376 = vsub.s32 %v373, %v375
        %v377 = vrot.slane %v370, %v376
        %v378 = vcombine.low %v285, %v297
        %v380 = vunpack.c.l.s4 1983009808
        %v381 = vunpack.c.0.s8 %v380
        %v382 = vlaneseq
        %v383 = vshrl.u32 %v382, 7
        %v384 = vsub.s32 %v381, %v383
        %v385 = vrot.slane %v378, %v384
        %v386 = vcombine.low %v377, %v385
        %v387 = vcombine.high %v377, %v385
        %v389 = vunpack.c.l.s4 1934713408
        %v390 = vunpack.c.0.s8 %v389
        %v391 = vlaneseq
        %v392 = vshrl.u32 %v391, 7
        %v393 = vsub.s32 %v390, %v392
        %v394 = vrot.slane %v386, %v393
        %v396 = vunpack.c.l.s4 1934713408
        %v397 = vunpack.c.0.s8 %v396
        %v398 = vlaneseq
        %v399 = vshrl.u32 %v398, 7
        %v400 = vsub.s32 %v397, %v399
        %v401 = vrot.slane %v387, %v400
        %v402 = vcombine.high %v394, 0
        %v403 = vcombine.high %v401, 0
        %v404 = vcombine.low %v282, %v294
        %v406 = vunpack.c.l.s4 1983009808
        %v407 = vunpack.c.0.s8 %v406
        %v408 = vlaneseq
        %v409 = vshrl.u32 %v408, 7
        %v410 = vsub.s32 %v407, %v409
        %v411 = vrot.slane %v404, %v410
        %v412 = vcombine.low %v288, %v300
        %v414 = vunpack.c.l.s4 1983009808
        %v415 = vunpack.c.0.s8 %v414
        %v416 = vlaneseq
        %v417 = vshrl.u32 %v416, 7
        %v418 = vsub.s32 %v415, %v417
        %v419 = vrot.slane %v412, %v418
        %v420 = vcombine.low %v411, %v419
        %v421 = vcombine.high %v411, %v419
        %v423 = vunpack.c.l.s4 1934713408
        %v424 = vunpack.c.0.s8 %v423
        %v425 = vlaneseq
        %v426 = vshrl.u32 %v425, 7
        %v427 = vsub.s32 %v424, %v426
        %v428 = vrot.slane %v420, %v427
        %v430 = vunpack.c.l.s4 1934713408
        %v431 = vunpack.c.0.s8 %v430
        %v432 = vlaneseq
        %v433 = vshrl.u32 %v432, 7
        %v434 = vsub.s32 %v431, %v433
        %v435 = vrot.slane %v421, %v434
        %v436 = vcombine.high %v428, 0
        %v437 = vcombine.high %v435, 0
        %v440 = vpack.i.b16 %v360, %v326
        %v441 = vshrl.u32 %v326, 16
        %v442 = vshrl.u32 %v360, 16
        %v443 = vpack.i.b16 %v442, %v441
        %v446 = vpack.i.b16 %v368, %v334
        %v447 = vshrl.u32 %v334, 16
        %v448 = vshrl.u32 %v368, 16
        %v449 = vpack.i.b16 %v448, %v447
        %v452 = vpack.i.b16 %v367, %v333
        %v453 = vshrl.u32 %v333, 16
        %v454 = vshrl.u32 %v367, 16
        %v455 = vpack.i.b16 %v454, %v453
        %v458 = vpack.i.b16 %v369, %v335
        %v459 = vshrl.u32 %v335, 16
        %v460 = vshrl.u32 %v369, 16
        %v461 = vpack.i.b16 %v460, %v459
        %v464 = vpack.i.b16 %v428, %v394
        %v465 = vshrl.u32 %v394, 16
        %v466 = vshrl.u32 %v428, 16
        %v467 = vpack.i.b16 %v466, %v465
        %v470 = vpack.i.b16 %v436, %v402
        %v471 = vshrl.u32 %v402, 16
        %v472 = vshrl.u32 %v436, 16
        %v473 = vpack.i.b16 %v472, %v471
        %v476 = vpack.i.b16 %v435, %v401
        %v477 = vshrl.u32 %v401, 16
        %v478 = vshrl.u32 %v435, 16
        %v479 = vpack.i.b16 %v478, %v477
        %v482 = vpack.i.b16 %v437, %v403
        %v483 = vshrl.u32 %v403, 16
        %v484 = vshrl.u32 %v437, 16
        %v485 = vpack.i.b16 %v484, %v483
        %v486 = vrot.slane %v254, 4
        %487 = vrot.lane.b32.xlu0 %v486, 8
        %v488 = vpop.permute.xlu0 %487
        %489 = vrot.lane.b32.xlu0 %v258, 120
        %v490 = vpop.permute.xlu0 %489
        %491 = vrot.lane.b32.xlu0 %v261, 120
        %v492 = vpop.permute.xlu0 %491
        %493 = vrot.lane.b32.xlu0 %v264, 120
        %v494 = vpop.permute.xlu0 %493
        %495 = vrot.lane.b32.xlu0 %v267, 120
        %v496 = vpop.permute.xlu0 %495
        %497 = vrot.lane.b32.xlu0 %v270, 120
        %v498 = vpop.permute.xlu0 %497
        %499 = vrot.lane.b32.xlu0 %v273, 120
        %v500 = vpop.permute.xlu0 %499
        %501 = vrot.lane.b32.xlu0 %v276, 120
        %v502 = vpop.permute.xlu0 %501
        %503 = vrot.lane.b32.xlu0 %v279, 120
        %v504 = vpop.permute.xlu0 %503
        %505 = vrot.lane.b32.xlu0 %v282, 120
        %v506 = vpop.permute.xlu0 %505
        %507 = vrot.lane.b32.xlu0 %v285, 120
        %v508 = vpop.permute.xlu0 %507
        %509 = vrot.lane.b32.xlu0 %v288, 120
        %v510 = vpop.permute.xlu0 %509
        %511 = vrot.lane.b32.xlu0 %v291, 120
        %v512 = vpop.permute.xlu0 %511
        %513 = vrot.lane.b32.xlu0 %v294, 120
        %v514 = vpop.permute.xlu0 %513
        %515 = vrot.lane.b32.xlu0 %v297, 120
        %v516 = vpop.permute.xlu0 %515
        %517 = vrot.lane.b32.xlu0 %v488, 120
        %v518 = vpop.permute.xlu0 %517
        %v534 = vcombine.low %v258, %v496
        %v536 = vunpack.c.l.s4 1983009808
        %v537 = vunpack.c.0.s8 %v536
        %v538 = vlaneseq
        %v539 = vshrl.u32 %v538, 7
        %v540 = vsub.s32 %v537, %v539
        %v541 = vrot.slane %v534, %v540
        %v542 = vcombine.low %v492, %v500
        %v544 = vunpack.c.l.s4 1983009808
        %v545 = vunpack.c.0.s8 %v544
        %v546 = vlaneseq
        %v547 = vshrl.u32 %v546, 7
        %v548 = vsub.s32 %v545, %v547
        %v549 = vrot.slane %v542, %v548
        %v550 = vcombine.low %v541, %v549
        %v551 = vcombine.high %v541, %v549
        %v553 = vunpack.c.l.s4 1934713408
        %v554 = vunpack.c.0.s8 %v553
        %v555 = vlaneseq
        %v556 = vshrl.u32 %v555, 7
        %v557 = vsub.s32 %v554, %v556
        %v558 = vrot.slane %v550, %v557
        %v560 = vunpack.c.l.s4 1934713408
        %v561 = vunpack.c.0.s8 %v560
        %v562 = vlaneseq
        %v563 = vshrl.u32 %v562, 7
        %v564 = vsub.s32 %v561, %v563
        %v565 = vrot.slane %v551, %v564
        %v566 = vcombine.high %v558, 0
        %v567 = vcombine.high %v565, 0
        %v568 = vcombine.low %v490, %v498
        %v570 = vunpack.c.l.s4 1983009808
        %v571 = vunpack.c.0.s8 %v570
        %v572 = vlaneseq
        %v573 = vshrl.u32 %v572, 7
        %v574 = vsub.s32 %v571, %v573
        %v575 = vrot.slane %v568, %v574
        %v576 = vcombine.low %v494, %v502
        %v578 = vunpack.c.l.s4 1983009808
        %v579 = vunpack.c.0.s8 %v578
        %v580 = vlaneseq
        %v581 = vshrl.u32 %v580, 7
        %v582 = vsub.s32 %v579, %v581
        %v583 = vrot.slane %v576, %v582
        %v584 = vcombine.low %v575, %v583
        %v585 = vcombine.high %v575, %v583
        %v587 = vunpack.c.l.s4 1934713408
        %v588 = vunpack.c.0.s8 %v587
        %v589 = vlaneseq
        %v590 = vshrl.u32 %v589, 7
        %v591 = vsub.s32 %v588, %v590
        %v592 = vrot.slane %v584, %v591
        %v594 = vunpack.c.l.s4 1934713408
        %v595 = vunpack.c.0.s8 %v594
        %v596 = vlaneseq
        %v597 = vshrl.u32 %v596, 7
        %v598 = vsub.s32 %v595, %v597
        %v599 = vrot.slane %v585, %v598
        %v600 = vcombine.high %v592, 0
        %v601 = vcombine.high %v599, 0
        %v602 = vcombine.low %v504, %v512
        %v604 = vunpack.c.l.s4 1983009808
        %v605 = vunpack.c.0.s8 %v604
        %v606 = vlaneseq
        %v607 = vshrl.u32 %v606, 7
        %v608 = vsub.s32 %v605, %v607
        %v609 = vrot.slane %v602, %v608
        %v610 = vcombine.low %v508, %v516
        %v612 = vunpack.c.l.s4 1983009808
        %v613 = vunpack.c.0.s8 %v612
        %v614 = vlaneseq
        %v615 = vshrl.u32 %v614, 7
        %v616 = vsub.s32 %v613, %v615
        %v617 = vrot.slane %v610, %v616
        %v618 = vcombine.low %v609, %v617
        %v619 = vcombine.high %v609, %v617
        %v621 = vunpack.c.l.s4 1934713408
        %v622 = vunpack.c.0.s8 %v621
        %v623 = vlaneseq
        %v624 = vshrl.u32 %v623, 7
        %v625 = vsub.s32 %v622, %v624
        %v626 = vrot.slane %v618, %v625
        %v628 = vunpack.c.l.s4 1934713408
        %v629 = vunpack.c.0.s8 %v628
        %v630 = vlaneseq
        %v631 = vshrl.u32 %v630, 7
        %v632 = vsub.s32 %v629, %v631
        %v633 = vrot.slane %v619, %v632
        %v634 = vcombine.high %v626, 0
        %v635 = vcombine.high %v633, 0
        %v636 = vcombine.low %v506, %v514
        %v638 = vunpack.c.l.s4 1983009808
        %v639 = vunpack.c.0.s8 %v638
        %v640 = vlaneseq
        %v641 = vshrl.u32 %v640, 7
        %v642 = vsub.s32 %v639, %v641
        %v643 = vrot.slane %v636, %v642
        %v644 = vcombine.low %v510, %v518
        %v646 = vunpack.c.l.s4 1983009808
        %v647 = vunpack.c.0.s8 %v646
        %v648 = vlaneseq
        %v649 = vshrl.u32 %v648, 7
        %v650 = vsub.s32 %v647, %v649
        %v651 = vrot.slane %v644, %v650
        %v652 = vcombine.low %v643, %v651
        %v653 = vcombine.high %v643, %v651
        %v655 = vunpack.c.l.s4 1934713408
        %v656 = vunpack.c.0.s8 %v655
        %v657 = vlaneseq
        %v658 = vshrl.u32 %v657, 7
        %v659 = vsub.s32 %v656, %v658
        %v660 = vrot.slane %v652, %v659
        %v662 = vunpack.c.l.s4 1934713408
        %v663 = vunpack.c.0.s8 %v662
        %v664 = vlaneseq
        %v665 = vshrl.u32 %v664, 7
        %v666 = vsub.s32 %v663, %v665
        %v667 = vrot.slane %v653, %v666
        %v668 = vcombine.high %v660, 0
        %v669 = vcombine.high %v667, 0
        %v672 = vpack.i.b16 %v592, %v558
        %v673 = vshrl.u32 %v558, 16
        %v674 = vshrl.u32 %v592, 16
        %v675 = vpack.i.b16 %v674, %v673
        %v678 = vpack.i.b16 %v600, %v566
        %v679 = vshrl.u32 %v566, 16
        %v680 = vshrl.u32 %v600, 16
        %v681 = vpack.i.b16 %v680, %v679
        %v684 = vpack.i.b16 %v599, %v565
        %v685 = vshrl.u32 %v565, 16
        %v686 = vshrl.u32 %v599, 16
        %v687 = vpack.i.b16 %v686, %v685
        %v690 = vpack.i.b16 %v601, %v567
        %v691 = vshrl.u32 %v567, 16
        %v692 = vshrl.u32 %v601, 16
        %v693 = vpack.i.b16 %v692, %v691
        %v696 = vpack.i.b16 %v660, %v626
        %v697 = vshrl.u32 %v626, 16
        %v698 = vshrl.u32 %v660, 16
        %v699 = vpack.i.b16 %v698, %v697
        %v702 = vpack.i.b16 %v668, %v634
        %v703 = vshrl.u32 %v634, 16
        %v704 = vshrl.u32 %v668, 16
        %v705 = vpack.i.b16 %v704, %v703
        %v708 = vpack.i.b16 %v667, %v633
        %v709 = vshrl.u32 %v633, 16
        %v710 = vshrl.u32 %v667, 16
        %v711 = vpack.i.b16 %v710, %v709
        %v714 = vpack.i.b16 %v669, %v635
        %v715 = vshrl.u32 %v635, 16
        %v716 = vshrl.u32 %v669, 16
        %v717 = vpack.i.b16 %v716, %v715
        %v718 = vrot.slane %v258, 4
        %719 = vrot.lane.b32.xlu0 %v486, 16
        %v720 = vpop.permute.xlu0 %719
        %721 = vrot.lane.b32.xlu0 %v718, 16
        %v722 = vpop.permute.xlu0 %721
        %723 = vrot.lane.b32.xlu0 %v258, 112
        %v724 = vpop.permute.xlu0 %723
        %725 = vrot.lane.b32.xlu0 %v261, 112
        %v726 = vpop.permute.xlu0 %725
        %727 = vrot.lane.b32.xlu0 %v264, 112
        %v728 = vpop.permute.xlu0 %727
        %729 = vrot.lane.b32.xlu0 %v267, 112
        %v730 = vpop.permute.xlu0 %729
        %731 = vrot.lane.b32.xlu0 %v270, 112
        %v732 = vpop.permute.xlu0 %731
        %733 = vrot.lane.b32.xlu0 %v273, 112
        %v734 = vpop.permute.xlu0 %733
        %735 = vrot.lane.b32.xlu0 %v276, 112
        %v736 = vpop.permute.xlu0 %735
        %737 = vrot.lane.b32.xlu0 %v279, 112
        %v738 = vpop.permute.xlu0 %737
        %739 = vrot.lane.b32.xlu0 %v282, 112
        %v740 = vpop.permute.xlu0 %739
        %741 = vrot.lane.b32.xlu0 %v285, 112
        %v742 = vpop.permute.xlu0 %741
        %743 = vrot.lane.b32.xlu0 %v288, 112
        %v744 = vpop.permute.xlu0 %743
        %745 = vrot.lane.b32.xlu0 %v291, 112
        %v746 = vpop.permute.xlu0 %745
        %747 = vrot.lane.b32.xlu0 %v294, 112
        %v748 = vpop.permute.xlu0 %747
        %749 = vrot.lane.b32.xlu0 %v720, 112
        %v750 = vpop.permute.xlu0 %749
        %751 = vrot.lane.b32.xlu0 %v722, 112
        %v752 = vpop.permute.xlu0 %751
        %v768 = vcombine.low %v261, %v730
        %v770 = vunpack.c.l.s4 1983009808
        %v771 = vunpack.c.0.s8 %v770
        %v772 = vlaneseq
        %v773 = vshrl.u32 %v772, 7
        %v774 = vsub.s32 %v771, %v773
        %v775 = vrot.slane %v768, %v774
        %v776 = vcombine.low %v726, %v734
        %v778 = vunpack.c.l.s4 1983009808
        %v779 = vunpack.c.0.s8 %v778
        %v780 = vlaneseq
        %v781 = vshrl.u32 %v780, 7
        %v782 = vsub.s32 %v779, %v781
        %v783 = vrot.slane %v776, %v782
        %v784 = vcombine.low %v775, %v783
        %v785 = vcombine.high %v775, %v783
        %v787 = vunpack.c.l.s4 1934713408
        %v788 = vunpack.c.0.s8 %v787
        %v789 = vlaneseq
        %v790 = vshrl.u32 %v789, 7
        %v791 = vsub.s32 %v788, %v790
        %v792 = vrot.slane %v784, %v791
        %v794 = vunpack.c.l.s4 1934713408
        %v795 = vunpack.c.0.s8 %v794
        %v796 = vlaneseq
        %v797 = vshrl.u32 %v796, 7
        %v798 = vsub.s32 %v795, %v797
        %v799 = vrot.slane %v785, %v798
        %v800 = vcombine.high %v792, 0
        %v801 = vcombine.high %v799, 0
        %v802 = vcombine.low %v724, %v732
        %v804 = vunpack.c.l.s4 1983009808
        %v805 = vunpack.c.0.s8 %v804
        %v806 = vlaneseq
        %v807 = vshrl.u32 %v806, 7
        %v808 = vsub.s32 %v805, %v807
        %v809 = vrot.slane %v802, %v808
        %v810 = vcombine.low %v728, %v736
        %v812 = vunpack.c.l.s4 1983009808
        %v813 = vunpack.c.0.s8 %v812
        %v814 = vlaneseq
        %v815 = vshrl.u32 %v814, 7
        %v816 = vsub.s32 %v813, %v815
        %v817 = vrot.slane %v810, %v816
        %v818 = vcombine.low %v809, %v817
        %v819 = vcombine.high %v809, %v817
        %v821 = vunpack.c.l.s4 1934713408
        %v822 = vunpack.c.0.s8 %v821
        %v823 = vlaneseq
        %v824 = vshrl.u32 %v823, 7
        %v825 = vsub.s32 %v822, %v824
        %v826 = vrot.slane %v818, %v825
        %v828 = vunpack.c.l.s4 1934713408
        %v829 = vunpack.c.0.s8 %v828
        %v830 = vlaneseq
        %v831 = vshrl.u32 %v830, 7
        %v832 = vsub.s32 %v829, %v831
        %v833 = vrot.slane %v819, %v832
        %v834 = vcombine.high %v826, 0
        %v835 = vcombine.high %v833, 0
        %v836 = vcombine.low %v738, %v746
        %v838 = vunpack.c.l.s4 1983009808
        %v839 = vunpack.c.0.s8 %v838
        %v840 = vlaneseq
        %v841 = vshrl.u32 %v840, 7
        %v842 = vsub.s32 %v839, %v841
        %v843 = vrot.slane %v836, %v842
        %v844 = vcombine.low %v742, %v750
        %v846 = vunpack.c.l.s4 1983009808
        %v847 = vunpack.c.0.s8 %v846
        %v848 = vlaneseq
        %v849 = vshrl.u32 %v848, 7
        %v850 = vsub.s32 %v847, %v849
        %v851 = vrot.slane %v844, %v850
        %v852 = vcombine.low %v843, %v851
        %v853 = vcombine.high %v843, %v851
        %v855 = vunpack.c.l.s4 1934713408
        %v856 = vunpack.c.0.s8 %v855
        %v857 = vlaneseq
        %v858 = vshrl.u32 %v857, 7
        %v859 = vsub.s32 %v856, %v858
        %v860 = vrot.slane %v852, %v859
        %v862 = vunpack.c.l.s4 1934713408
        %v863 = vunpack.c.0.s8 %v862
        %v864 = vlaneseq
        %v865 = vshrl.u32 %v864, 7
        %v866 = vsub.s32 %v863, %v865
        %v867 = vrot.slane %v853, %v866
        %v868 = vcombine.high %v860, 0
        %v869 = vcombine.high %v867, 0
        %v870 = vcombine.low %v740, %v748
        %v872 = vunpack.c.l.s4 1983009808
        %v873 = vunpack.c.0.s8 %v872
        %v874 = vlaneseq
        %v875 = vshrl.u32 %v874, 7
        %v876 = vsub.s32 %v873, %v875
        %v877 = vrot.slane %v870, %v876
        %v878 = vcombine.low %v744, %v752
        %v880 = vunpack.c.l.s4 1983009808
        %v881 = vunpack.c.0.s8 %v880
        %v882 = vlaneseq
        %v883 = vshrl.u32 %v882, 7
        %v884 = vsub.s32 %v881, %v883
        %v885 = vrot.slane %v878, %v884
        %v886 = vcombine.low %v877, %v885
        %v887 = vcombine.high %v877, %v885
        %v889 = vunpack.c.l.s4 1934713408
        %v890 = vunpack.c.0.s8 %v889
        %v891 = vlaneseq
        %v892 = vshrl.u32 %v891, 7
        %v893 = vsub.s32 %v890, %v892
        %v894 = vrot.slane %v886, %v893
        %v896 = vunpack.c.l.s4 1934713408
        %v897 = vunpack.c.0.s8 %v896
        %v898 = vlaneseq
        %v899 = vshrl.u32 %v898, 7
        %v900 = vsub.s32 %v897, %v899
        %v901 = vrot.slane %v887, %v900
        %v902 = vcombine.high %v894, 0
        %v903 = vcombine.high %v901, 0
        %v906 = vpack.i.b16 %v826, %v792
        %v907 = vshrl.u32 %v792, 16
        %v908 = vshrl.u32 %v826, 16
        %v909 = vpack.i.b16 %v908, %v907
        %v912 = vpack.i.b16 %v834, %v800
        %v913 = vshrl.u32 %v800, 16
        %v914 = vshrl.u32 %v834, 16
        %v915 = vpack.i.b16 %v914, %v913
        %v918 = vpack.i.b16 %v833, %v799
        %v919 = vshrl.u32 %v799, 16
        %v920 = vshrl.u32 %v833, 16
        %v921 = vpack.i.b16 %v920, %v919
        %v924 = vpack.i.b16 %v835, %v801
        %v925 = vshrl.u32 %v801, 16
        %v926 = vshrl.u32 %v835, 16
        %v927 = vpack.i.b16 %v926, %v925
        %v930 = vpack.i.b16 %v894, %v860
        %v931 = vshrl.u32 %v860, 16
        %v932 = vshrl.u32 %v894, 16
        %v933 = vpack.i.b16 %v932, %v931
        %v936 = vpack.i.b16 %v902, %v868
        %v937 = vshrl.u32 %v868, 16
        %v938 = vshrl.u32 %v902, 16
        %v939 = vpack.i.b16 %v938, %v937
        %v942 = vpack.i.b16 %v901, %v867
        %v943 = vshrl.u32 %v867, 16
        %v944 = vshrl.u32 %v901, 16
        %v945 = vpack.i.b16 %v944, %v943
        %v948 = vpack.i.b16 %v903, %v869
        %v949 = vshrl.u32 %v869, 16
        %v950 = vshrl.u32 %v903, 16
        %v951 = vpack.i.b16 %v950, %v949
        %953 = vrot.lane.b32.xlu0 %v255, 120
        %v954 = vpop.permute.xlu0 %953
        %955 = vrot.lane.b32.xlu0 %v255, 112
        %v956 = vpop.permute.xlu0 %955
        %957 = vrot.lane.b32.xlu0 %v255, 104
        %v958 = vpop.permute.xlu0 %957
        %959 = vrot.lane.b32.xlu0 %v255, 96
        %v960 = vpop.permute.xlu0 %959
        %961 = vrot.lane.b32.xlu0 %v255, 88
        %v962 = vpop.permute.xlu0 %961
        %963 = vrot.lane.b32.xlu0 %v255, 80
        %v964 = vpop.permute.xlu0 %963
        %965 = vrot.lane.b32.xlu0 %v255, 72
        %v966 = vpop.permute.xlu0 %965
        %967 = vrot.lane.b32.xlu0 %v255, 64
        %v968 = vpop.permute.xlu0 %967
        %969 = vrot.lane.b32.xlu0 %v255, 56
        %v970 = vpop.permute.xlu0 %969
        %971 = vrot.lane.b32.xlu0 %v255, 48
        %v972 = vpop.permute.xlu0 %971
        %973 = vrot.lane.b32.xlu0 %v255, 40
        %v974 = vpop.permute.xlu0 %973
        %975 = vrot.lane.b32.xlu0 %v255, 32
        %v976 = vpop.permute.xlu0 %975
        %977 = vrot.lane.b32.xlu0 %v255, 24
        %v978 = vpop.permute.xlu0 %977
        %979 = vrot.lane.b32.xlu0 %v255, 16
        %v980 = vpop.permute.xlu0 %979
        %981 = vrot.lane.b32.xlu0 %v255, 8
        %v982 = vpop.permute.xlu0 %981
        %vm983 = vsmask.f32 3328
        %vm984 = vsmask.f32 7440
        %vm985 = vmor %vm983, %vm984
        %v987 = vshrl.u32 %v254, 16
        %v989 = vrot.slane %v987, 4
        %v990 = vshll.u32 %v254, 16
        %v992 = vrot.slane %v990, 5
        %v993 = vor.u32 %v989, %v992
        %v994 = vrot.slane %v993, 4
        %v996 = vshll.u32 %v255, 16
        %v998 = vrot.slane %v996, 5
        %v999 = vsel %vm985, %v994, %v998
        %v1001 = vshrl.u32 %v258, 16
        %v1003 = vrot.slane %v1001, 4
        %v1004 = vshll.u32 %v258, 16
        %v1006 = vrot.slane %v1004, 5
        %v1007 = vor.u32 %v1003, %v1006
        %v1008 = vrot.slane %v1007, 4
        %v1010 = vshll.u32 %v954, 16
        %v1012 = vrot.slane %v1010, 5
        %v1013 = vsel %vm985, %v1008, %v1012
        %v1015 = vshrl.u32 %v261, 16
        %v1017 = vrot.slane %v1015, 4
        %v1018 = vshll.u32 %v261, 16
        %v1020 = vrot.slane %v1018, 5
        %v1021 = vor.u32 %v1017, %v1020
        %v1022 = vrot.slane %v1021, 4
        %v1024 = vshll.u32 %v956, 16
        %v1026 = vrot.slane %v1024, 5
        %v1027 = vsel %vm985, %v1022, %v1026
        %v1029 = vshrl.u32 %v264, 16
        %v1031 = vrot.slane %v1029, 4
        %v1032 = vshll.u32 %v264, 16
        %v1034 = vrot.slane %v1032, 5
        %v1035 = vor.u32 %v1031, %v1034
        %v1036 = vrot.slane %v1035, 4
        %v1038 = vshll.u32 %v958, 16
        %v1040 = vrot.slane %v1038, 5
        %v1041 = vsel %vm985, %v1036, %v1040
        %v1043 = vshrl.u32 %v267, 16
        %v1045 = vrot.slane %v1043, 4
        %v1046 = vshll.u32 %v267, 16
        %v1048 = vrot.slane %v1046, 5
        %v1049 = vor.u32 %v1045, %v1048
        %v1050 = vrot.slane %v1049, 4
        %v1052 = vshll.u32 %v960, 16
        %v1054 = vrot.slane %v1052, 5
        %v1055 = vsel %vm985, %v1050, %v1054
        %v1057 = vshrl.u32 %v270, 16
        %v1059 = vrot.slane %v1057, 4
        %v1060 = vshll.u32 %v270, 16
        %v1062 = vrot.slane %v1060, 5
        %v1063 = vor.u32 %v1059, %v1062
        %v1064 = vrot.slane %v1063, 4
        %v1066 = vshll.u32 %v962, 16
        %v1068 = vrot.slane %v1066, 5
        %v1069 = vsel %vm985, %v1064, %v1068
        %v1071 = vshrl.u32 %v273, 16
        %v1073 = vrot.slane %v1071, 4
        %v1074 = vshll.u32 %v273, 16
        %v1076 = vrot.slane %v1074, 5
        %v1077 = vor.u32 %v1073, %v1076
        %v1078 = vrot.slane %v1077, 4
        %v1080 = vshll.u32 %v964, 16
        %v1082 = vrot.slane %v1080, 5
        %v1083 = vsel %vm985, %v1078, %v1082
        %v1085 = vshrl.u32 %v276, 16
        %v1087 = vrot.slane %v1085, 4
        %v1088 = vshll.u32 %v276, 16
        %v1090 = vrot.slane %v1088, 5
        %v1091 = vor.u32 %v1087, %v1090
        %v1092 = vrot.slane %v1091, 4
        %v1094 = vshll.u32 %v966, 16
        %v1096 = vrot.slane %v1094, 5
        %v1097 = vsel %vm985, %v1092, %v1096
        %v1099 = vshrl.u32 %v279, 16
        %v1101 = vrot.slane %v1099, 4
        %v1102 = vshll.u32 %v279, 16
        %v1104 = vrot.slane %v1102, 5
        %v1105 = vor.u32 %v1101, %v1104
        %v1106 = vrot.slane %v1105, 4
        %v1108 = vshll.u32 %v968, 16
        %v1110 = vrot.slane %v1108, 5
        %v1111 = vsel %vm985, %v1106, %v1110
        %v1113 = vshrl.u32 %v282, 16
        %v1115 = vrot.slane %v1113, 4
        %v1116 = vshll.u32 %v282, 16
        %v1118 = vrot.slane %v1116, 5
        %v1119 = vor.u32 %v1115, %v1118
        %v1120 = vrot.slane %v1119, 4
        %v1122 = vshll.u32 %v970, 16
        %v1124 = vrot.slane %v1122, 5
        %v1125 = vsel %vm985, %v1120, %v1124
        %v1127 = vshrl.u32 %v285, 16
        %v1129 = vrot.slane %v1127, 4
        %v1130 = vshll.u32 %v285, 16
        %v1132 = vrot.slane %v1130, 5
        %v1133 = vor.u32 %v1129, %v1132
        %v1134 = vrot.slane %v1133, 4
        %v1136 = vshll.u32 %v972, 16
        %v1138 = vrot.slane %v1136, 5
        %v1139 = vsel %vm985, %v1134, %v1138
        %v1141 = vshrl.u32 %v288, 16
        %v1143 = vrot.slane %v1141, 4
        %v1144 = vshll.u32 %v288, 16
        %v1146 = vrot.slane %v1144, 5
        %v1147 = vor.u32 %v1143, %v1146
        %v1148 = vrot.slane %v1147, 4
        %v1150 = vshll.u32 %v974, 16
        %v1152 = vrot.slane %v1150, 5
        %v1153 = vsel %vm985, %v1148, %v1152
        %v1155 = vshrl.u32 %v291, 16
        %v1157 = vrot.slane %v1155, 4
        %v1158 = vshll.u32 %v291, 16
        %v1160 = vrot.slane %v1158, 5
        %v1161 = vor.u32 %v1157, %v1160
        %v1162 = vrot.slane %v1161, 4
        %v1164 = vshll.u32 %v976, 16
        %v1166 = vrot.slane %v1164, 5
        %v1167 = vsel %vm985, %v1162, %v1166
        %v1169 = vshrl.u32 %v294, 16
        %v1171 = vrot.slane %v1169, 4
        %v1172 = vshll.u32 %v294, 16
        %v1174 = vrot.slane %v1172, 5
        %v1175 = vor.u32 %v1171, %v1174
        %v1176 = vrot.slane %v1175, 4
        %v1178 = vshll.u32 %v978, 16
        %v1180 = vrot.slane %v1178, 5
        %v1181 = vsel %vm985, %v1176, %v1180
        %v1183 = vshrl.u32 %v297, 16
        %v1185 = vrot.slane %v1183, 4
        %v1186 = vshll.u32 %v297, 16
        %v1188 = vrot.slane %v1186, 5
        %v1189 = vor.u32 %v1185, %v1188
        %v1190 = vrot.slane %v1189, 4
        %v1192 = vshll.u32 %v980, 16
        %v1194 = vrot.slane %v1192, 5
        %v1195 = vsel %vm985, %v1190, %v1194
        %v1197 = vshrl.u32 %v300, 16
        %v1199 = vrot.slane %v1197, 4
        %v1200 = vshll.u32 %v300, 16
        %v1202 = vrot.slane %v1200, 5
        %v1203 = vor.u32 %v1199, %v1202
        %v1204 = vrot.slane %v1203, 4
        %v1206 = vshll.u32 %v982, 16
        %v1208 = vrot.slane %v1206, 5
        %v1209 = vsel %vm985, %v1204, %v1208
        %v1226 = vcombine.low %v999, %v1055
        %v1228 = vunpack.c.l.s4 1983009808
        %v1229 = vunpack.c.0.s8 %v1228
        %v1230 = vlaneseq
        %v1231 = vshrl.u32 %v1230, 7
        %v1232 = vsub.s32 %v1229, %v1231
        %v1233 = vrot.slane %v1226, %v1232
        %v1234 = vcombine.low %v1027, %v1083
        %v1236 = vunpack.c.l.s4 1983009808
        %v1237 = vunpack.c.0.s8 %v1236
        %v1238 = vlaneseq
        %v1239 = vshrl.u32 %v1238, 7
        %v1240 = vsub.s32 %v1237, %v1239
        %v1241 = vrot.slane %v1234, %v1240
        %v1242 = vcombine.low %v1233, %v1241
        %v1243 = vcombine.high %v1233, %v1241
        %v1245 = vunpack.c.l.s4 1934713408
        %v1246 = vunpack.c.0.s8 %v1245
        %v1247 = vlaneseq
        %v1248 = vshrl.u32 %v1247, 7
        %v1249 = vsub.s32 %v1246, %v1248
        %v1250 = vrot.slane %v1242, %v1249
        %v1252 = vunpack.c.l.s4 1934713408
        %v1253 = vunpack.c.0.s8 %v1252
        %v1254 = vlaneseq
        %v1255 = vshrl.u32 %v1254, 7
        %v1256 = vsub.s32 %v1253, %v1255
        %v1257 = vrot.slane %v1243, %v1256
        %v1258 = vcombine.high %v1250, 0
        %v1259 = vcombine.high %v1257, 0
        %v1260 = vcombine.low %v1013, %v1069
        %v1262 = vunpack.c.l.s4 1983009808
        %v1263 = vunpack.c.0.s8 %v1262
        %v1264 = vlaneseq
        %v1265 = vshrl.u32 %v1264, 7
        %v1266 = vsub.s32 %v1263, %v1265
        %v1267 = vrot.slane %v1260, %v1266
        %v1268 = vcombine.low %v1041, %v1097
        %v1270 = vunpack.c.l.s4 1983009808
        %v1271 = vunpack.c.0.s8 %v1270
        %v1272 = vlaneseq
        %v1273 = vshrl.u32 %v1272, 7
        %v1274 = vsub.s32 %v1271, %v1273
        %v1275 = vrot.slane %v1268, %v1274
        %v1276 = vcombine.low %v1267, %v1275
        %v1277 = vcombine.high %v1267, %v1275
        %v1279 = vunpack.c.l.s4 1934713408
        %v1280 = vunpack.c.0.s8 %v1279
        %v1281 = vlaneseq
        %v1282 = vshrl.u32 %v1281, 7
        %v1283 = vsub.s32 %v1280, %v1282
        %v1284 = vrot.slane %v1276, %v1283
        %v1286 = vunpack.c.l.s4 1934713408
        %v1287 = vunpack.c.0.s8 %v1286
        %v1288 = vlaneseq
        %v1289 = vshrl.u32 %v1288, 7
        %v1290 = vsub.s32 %v1287, %v1289
        %v1291 = vrot.slane %v1277, %v1290
        %v1292 = vcombine.high %v1284, 0
        %v1293 = vcombine.high %v1291, 0
        %v1294 = vcombine.low %v1111, %v1167
        %v1296 = vunpack.c.l.s4 1983009808
        %v1297 = vunpack.c.0.s8 %v1296
        %v1298 = vlaneseq
        %v1299 = vshrl.u32 %v1298, 7
        %v1300 = vsub.s32 %v1297, %v1299
        %v1301 = vrot.slane %v1294, %v1300
        %v1302 = vcombine.low %v1139, %v1195
        %v1304 = vunpack.c.l.s4 1983009808
        %v1305 = vunpack.c.0.s8 %v1304
        %v1306 = vlaneseq
        %v1307 = vshrl.u32 %v1306, 7
        %v1308 = vsub.s32 %v1305, %v1307
        %v1309 = vrot.slane %v1302, %v1308
        %v1310 = vcombine.low %v1301, %v1309
        %v1311 = vcombine.high %v1301, %v1309
        %v1313 = vunpack.c.l.s4 1934713408
        %v1314 = vunpack.c.0.s8 %v1313
        %v1315 = vlaneseq
        %v1316 = vshrl.u32 %v1315, 7
        %v1317 = vsub.s32 %v1314, %v1316
        %v1318 = vrot.slane %v1310, %v1317
        %v1320 = vunpack.c.l.s4 1934713408
        %v1321 = vunpack.c.0.s8 %v1320
        %v1322 = vlaneseq
        %v1323 = vshrl.u32 %v1322, 7
        %v1324 = vsub.s32 %v1321, %v1323
        %v1325 = vrot.slane %v1311, %v1324
        %v1326 = vcombine.high %v1318, 0
        %v1327 = vcombine.high %v1325, 0
        %v1328 = vcombine.low %v1125, %v1181
        %v1330 = vunpack.c.l.s4 1983009808
        %v1331 = vunpack.c.0.s8 %v1330
        %v1332 = vlaneseq
        %v1333 = vshrl.u32 %v1332, 7
        %v1334 = vsub.s32 %v1331, %v1333
        %v1335 = vrot.slane %v1328, %v1334
        %v1336 = vcombine.low %v1153, %v1209
        %v1338 = vunpack.c.l.s4 1983009808
        %v1339 = vunpack.c.0.s8 %v1338
        %v1340 = vlaneseq
        %v1341 = vshrl.u32 %v1340, 7
        %v1342 = vsub.s32 %v1339, %v1341
        %v1343 = vrot.slane %v1336, %v1342
        %v1344 = vcombine.low %v1335, %v1343
        %v1345 = vcombine.high %v1335, %v1343
        %v1347 = vunpack.c.l.s4 1934713408
        %v1348 = vunpack.c.0.s8 %v1347
        %v1349 = vlaneseq
        %v1350 = vshrl.u32 %v1349, 7
        %v1351 = vsub.s32 %v1348, %v1350
        %v1352 = vrot.slane %v1344, %v1351
        %v1354 = vunpack.c.l.s4 1934713408
        %v1355 = vunpack.c.0.s8 %v1354
        %v1356 = vlaneseq
        %v1357 = vshrl.u32 %v1356, 7
        %v1358 = vsub.s32 %v1355, %v1357
        %v1359 = vrot.slane %v1345, %v1358
        %v1360 = vcombine.high %v1352, 0
        %v1361 = vcombine.high %v1359, 0
        %v1364 = vpack.i.b16 %v1284, %v1250
        %v1365 = vshrl.u32 %v1250, 16
        %v1366 = vshrl.u32 %v1284, 16
        %v1367 = vpack.i.b16 %v1366, %v1365
        %v1370 = vpack.i.b16 %v1292, %v1258
        %v1371 = vshrl.u32 %v1258, 16
        %v1372 = vshrl.u32 %v1292, 16
        %v1373 = vpack.i.b16 %v1372, %v1371
        %v1376 = vpack.i.b16 %v1291, %v1257
        %v1377 = vshrl.u32 %v1257, 16
        %v1378 = vshrl.u32 %v1291, 16
        %v1379 = vpack.i.b16 %v1378, %v1377
        %v1382 = vpack.i.b16 %v1293, %v1259
        %v1383 = vshrl.u32 %v1259, 16
        %v1384 = vshrl.u32 %v1293, 16
        %v1385 = vpack.i.b16 %v1384, %v1383
        %v1388 = vpack.i.b16 %v1352, %v1318
        %v1389 = vshrl.u32 %v1318, 16
        %v1390 = vshrl.u32 %v1352, 16
        %v1391 = vpack.i.b16 %v1390, %v1389
        %v1394 = vpack.i.b16 %v1360, %v1326
        %v1395 = vshrl.u32 %v1326, 16
        %v1396 = vshrl.u32 %v1360, 16
        %v1397 = vpack.i.b16 %v1396, %v1395
        %v1400 = vpack.i.b16 %v1359, %v1325
        %v1401 = vshrl.u32 %v1325, 16
        %v1402 = vshrl.u32 %v1359, 16
        %v1403 = vpack.i.b16 %v1402, %v1401
        %v1406 = vpack.i.b16 %v1361, %v1327
        %v1407 = vshrl.u32 %v1327, 16
        %v1408 = vshrl.u32 %v1361, 16
        %v1409 = vpack.i.b16 %v1408, %v1407
        %v1410 = vrot.slane %v255, 4
        %1411 = vrot.lane.b32.xlu0 %v1410, 8
        %v1412 = vpop.permute.xlu0 %1411
        %v1414 = vshrl.u32 %v488, 16
        %v1416 = vrot.slane %v1414, 4
        %v1417 = vshll.u32 %v488, 16
        %v1419 = vrot.slane %v1417, 5
        %v1420 = vor.u32 %v1416, %v1419
        %v1421 = vrot.slane %v1420, 4
        %v1423 = vshll.u32 %v1412, 16
        %v1425 = vrot.slane %v1423, 5
        %v1426 = vsel %vm985, %v1421, %v1425
        %1427 = vrot.lane.b32.xlu0 %v999, 120
        %v1428 = vpop.permute.xlu0 %1427
        %1429 = vrot.lane.b32.xlu0 %v1013, 120
        %v1430 = vpop.permute.xlu0 %1429
        %1431 = vrot.lane.b32.xlu0 %v1027, 120
        %v1432 = vpop.permute.xlu0 %1431
        %1433 = vrot.lane.b32.xlu0 %v1041, 120
        %v1434 = vpop.permute.xlu0 %1433
        %1435 = vrot.lane.b32.xlu0 %v1055, 120
        %v1436 = vpop.permute.xlu0 %1435
        %1437 = vrot.lane.b32.xlu0 %v1069, 120
        %v1438 = vpop.permute.xlu0 %1437
        %1439 = vrot.lane.b32.xlu0 %v1083, 120
        %v1440 = vpop.permute.xlu0 %1439
        %1441 = vrot.lane.b32.xlu0 %v1097, 120
        %v1442 = vpop.permute.xlu0 %1441
        %1443 = vrot.lane.b32.xlu0 %v1111, 120
        %v1444 = vpop.permute.xlu0 %1443
        %1445 = vrot.lane.b32.xlu0 %v1125, 120
        %v1446 = vpop.permute.xlu0 %1445
        %1447 = vrot.lane.b32.xlu0 %v1139, 120
        %v1448 = vpop.permute.xlu0 %1447
        %1449 = vrot.lane.b32.xlu0 %v1153, 120
        %v1450 = vpop.permute.xlu0 %1449
        %1451 = vrot.lane.b32.xlu0 %v1167, 120
        %v1452 = vpop.permute.xlu0 %1451
        %1453 = vrot.lane.b32.xlu0 %v1181, 120
        %v1454 = vpop.permute.xlu0 %1453
        %1455 = vrot.lane.b32.xlu0 %v1195, 120
        %v1456 = vpop.permute.xlu0 %1455
        %1457 = vrot.lane.b32.xlu0 %v1426, 120
        %v1458 = vpop.permute.xlu0 %1457
        %v1475 = vcombine.low %v1428, %v1436
        %v1477 = vunpack.c.l.s4 1983009808
        %v1478 = vunpack.c.0.s8 %v1477
        %v1479 = vlaneseq
        %v1480 = vshrl.u32 %v1479, 7
        %v1481 = vsub.s32 %v1478, %v1480
        %v1482 = vrot.slane %v1475, %v1481
        %v1483 = vcombine.low %v1432, %v1440
        %v1485 = vunpack.c.l.s4 1983009808
        %v1486 = vunpack.c.0.s8 %v1485
        %v1487 = vlaneseq
        %v1488 = vshrl.u32 %v1487, 7
        %v1489 = vsub.s32 %v1486, %v1488
        %v1490 = vrot.slane %v1483, %v1489
        %v1491 = vcombine.low %v1482, %v1490
        %v1492 = vcombine.high %v1482, %v1490
        %v1494 = vunpack.c.l.s4 1934713408
        %v1495 = vunpack.c.0.s8 %v1494
        %v1496 = vlaneseq
        %v1497 = vshrl.u32 %v1496, 7
        %v1498 = vsub.s32 %v1495, %v1497
        %v1499 = vrot.slane %v1491, %v1498
        %v1501 = vunpack.c.l.s4 1934713408
        %v1502 = vunpack.c.0.s8 %v1501
        %v1503 = vlaneseq
        %v1504 = vshrl.u32 %v1503, 7
        %v1505 = vsub.s32 %v1502, %v1504
        %v1506 = vrot.slane %v1492, %v1505
        %v1507 = vcombine.high %v1499, 0
        %v1508 = vcombine.high %v1506, 0
        %v1509 = vcombine.low %v1430, %v1438
        %v1511 = vunpack.c.l.s4 1983009808
        %v1512 = vunpack.c.0.s8 %v1511
        %v1513 = vlaneseq
        %v1514 = vshrl.u32 %v1513, 7
        %v1515 = vsub.s32 %v1512, %v1514
        %v1516 = vrot.slane %v1509, %v1515
        %v1517 = vcombine.low %v1434, %v1442
        %v1519 = vunpack.c.l.s4 1983009808
        %v1520 = vunpack.c.0.s8 %v1519
        %v1521 = vlaneseq
        %v1522 = vshrl.u32 %v1521, 7
        %v1523 = vsub.s32 %v1520, %v1522
        %v1524 = vrot.slane %v1517, %v1523
        %v1525 = vcombine.low %v1516, %v1524
        %v1526 = vcombine.high %v1516, %v1524
        %v1528 = vunpack.c.l.s4 1934713408
        %v1529 = vunpack.c.0.s8 %v1528
        %v1530 = vlaneseq
        %v1531 = vshrl.u32 %v1530, 7
        %v1532 = vsub.s32 %v1529, %v1531
        %v1533 = vrot.slane %v1525, %v1532
        %v1535 = vunpack.c.l.s4 1934713408
        %v1536 = vunpack.c.0.s8 %v1535
        %v1537 = vlaneseq
        %v1538 = vshrl.u32 %v1537, 7
        %v1539 = vsub.s32 %v1536, %v1538
        %v1540 = vrot.slane %v1526, %v1539
        %v1541 = vcombine.high %v1533, 0
        %v1542 = vcombine.high %v1540, 0
        %v1543 = vcombine.low %v1444, %v1452
        %v1545 = vunpack.c.l.s4 1983009808
        %v1546 = vunpack.c.0.s8 %v1545
        %v1547 = vlaneseq
        %v1548 = vshrl.u32 %v1547, 7
        %v1549 = vsub.s32 %v1546, %v1548
        %v1550 = vrot.slane %v1543, %v1549
        %v1551 = vcombine.low %v1448, %v1456
        %v1553 = vunpack.c.l.s4 1983009808
        %v1554 = vunpack.c.0.s8 %v1553
        %v1555 = vlaneseq
        %v1556 = vshrl.u32 %v1555, 7
        %v1557 = vsub.s32 %v1554, %v1556
        %v1558 = vrot.slane %v1551, %v1557
        %v1559 = vcombine.low %v1550, %v1558
        %v1560 = vcombine.high %v1550, %v1558
        %v1562 = vunpack.c.l.s4 1934713408
        %v1563 = vunpack.c.0.s8 %v1562
        %v1564 = vlaneseq
        %v1565 = vshrl.u32 %v1564, 7
        %v1566 = vsub.s32 %v1563, %v1565
        %v1567 = vrot.slane %v1559, %v1566
        %v1569 = vunpack.c.l.s4 1934713408
        %v1570 = vunpack.c.0.s8 %v1569
        %v1571 = vlaneseq
        %v1572 = vshrl.u32 %v1571, 7
        %v1573 = vsub.s32 %v1570, %v1572
        %v1574 = vrot.slane %v1560, %v1573
        %v1575 = vcombine.high %v1567, 0
        %v1576 = vcombine.high %v1574, 0
        %v1577 = vcombine.low %v1446, %v1454
        %v1579 = vunpack.c.l.s4 1983009808
        %v1580 = vunpack.c.0.s8 %v1579
        %v1581 = vlaneseq
        %v1582 = vshrl.u32 %v1581, 7
        %v1583 = vsub.s32 %v1580, %v1582
        %v1584 = vrot.slane %v1577, %v1583
        %v1585 = vcombine.low %v1450, %v1458
        %v1587 = vunpack.c.l.s4 1983009808
        %v1588 = vunpack.c.0.s8 %v1587
        %v1589 = vlaneseq
        %v1590 = vshrl.u32 %v1589, 7
        %v1591 = vsub.s32 %v1588, %v1590
        %v1592 = vrot.slane %v1585, %v1591
        %v1593 = vcombine.low %v1584, %v1592
        %v1594 = vcombine.high %v1584, %v1592
        %v1596 = vunpack.c.l.s4 1934713408
        %v1597 = vunpack.c.0.s8 %v1596
        %v1598 = vlaneseq
        %v1599 = vshrl.u32 %v1598, 7
        %v1600 = vsub.s32 %v1597, %v1599
        %v1601 = vrot.slane %v1593, %v1600
        %v1603 = vunpack.c.l.s4 1934713408
        %v1604 = vunpack.c.0.s8 %v1603
        %v1605 = vlaneseq
        %v1606 = vshrl.u32 %v1605, 7
        %v1607 = vsub.s32 %v1604, %v1606
        %v1608 = vrot.slane %v1594, %v1607
        %v1609 = vcombine.high %v1601, 0
        %v1610 = vcombine.high %v1608, 0
        %v1613 = vpack.i.b16 %v1533, %v1499
        %v1614 = vshrl.u32 %v1499, 16
        %v1615 = vshrl.u32 %v1533, 16
        %v1616 = vpack.i.b16 %v1615, %v1614
        %v1619 = vpack.i.b16 %v1541, %v1507
        %v1620 = vshrl.u32 %v1507, 16
        %v1621 = vshrl.u32 %v1541, 16
        %v1622 = vpack.i.b16 %v1621, %v1620
        %v1625 = vpack.i.b16 %v1540, %v1506
        %v1626 = vshrl.u32 %v1506, 16
        %v1627 = vshrl.u32 %v1540, 16
        %v1628 = vpack.i.b16 %v1627, %v1626
        %v1631 = vpack.i.b16 %v1542, %v1508
        %v1632 = vshrl.u32 %v1508, 16
        %v1633 = vshrl.u32 %v1542, 16
        %v1634 = vpack.i.b16 %v1633, %v1632
        %v1637 = vpack.i.b16 %v1601, %v1567
        %v1638 = vshrl.u32 %v1567, 16
        %v1639 = vshrl.u32 %v1601, 16
        %v1640 = vpack.i.b16 %v1639, %v1638
        %v1643 = vpack.i.b16 %v1609, %v1575
        %v1644 = vshrl.u32 %v1575, 16
        %v1645 = vshrl.u32 %v1609, 16
        %v1646 = vpack.i.b16 %v1645, %v1644
        %v1649 = vpack.i.b16 %v1608, %v1574
        %v1650 = vshrl.u32 %v1574, 16
        %v1651 = vshrl.u32 %v1608, 16
        %v1652 = vpack.i.b16 %v1651, %v1650
        %v1655 = vpack.i.b16 %v1610, %v1576
        %v1656 = vshrl.u32 %v1576, 16
        %v1657 = vshrl.u32 %v1610, 16
        %v1658 = vpack.i.b16 %v1657, %v1656
        %v1659 = vrot.slane %v954, 4
        %1660 = vrot.lane.b32.xlu0 %v1410, 16
        %v1661 = vpop.permute.xlu0 %1660
        %1662 = vrot.lane.b32.xlu0 %v1659, 16
        %v1663 = vpop.permute.xlu0 %1662
        %v1665 = vshrl.u32 %v720, 16
        %v1667 = vrot.slane %v1665, 4
        %v1668 = vshll.u32 %v720, 16
        %v1670 = vrot.slane %v1668, 5
        %v1671 = vor.u32 %v1667, %v1670
        %v1672 = vrot.slane %v1671, 4
        %v1674 = vshll.u32 %v1661, 16
        %v1676 = vrot.slane %v1674, 5
        %v1677 = vsel %vm985, %v1672, %v1676
        %v1679 = vshrl.u32 %v722, 16
        %v1681 = vrot.slane %v1679, 4
        %v1682 = vshll.u32 %v722, 16
        %v1684 = vrot.slane %v1682, 5
        %v1685 = vor.u32 %v1681, %v1684
        %v1686 = vrot.slane %v1685, 4
        %v1688 = vshll.u32 %v1663, 16
        %v1690 = vrot.slane %v1688, 5
        %v1691 = vsel %vm985, %v1686, %v1690
        %1692 = vrot.lane.b32.xlu0 %v999, 112
        %v1693 = vpop.permute.xlu0 %1692
        %1694 = vrot.lane.b32.xlu0 %v1013, 112
        %v1695 = vpop.permute.xlu0 %1694
        %1696 = vrot.lane.b32.xlu0 %v1027, 112
        %v1697 = vpop.permute.xlu0 %1696
        %1698 = vrot.lane.b32.xlu0 %v1041, 112
        %v1699 = vpop.permute.xlu0 %1698
        %1700 = vrot.lane.b32.xlu0 %v1055, 112
        %v1701 = vpop.permute.xlu0 %1700
        %1702 = vrot.lane.b32.xlu0 %v1069, 112
        %v1703 = vpop.permute.xlu0 %1702
        %1704 = vrot.lane.b32.xlu0 %v1083, 112
        %v1705 = vpop.permute.xlu0 %1704
        %1706 = vrot.lane.b32.xlu0 %v1097, 112
        %v1707 = vpop.permute.xlu0 %1706
        %1708 = vrot.lane.b32.xlu0 %v1111, 112
        %v1709 = vpop.permute.xlu0 %1708
        %1710 = vrot.lane.b32.xlu0 %v1125, 112
        %v1711 = vpop.permute.xlu0 %1710
        %1712 = vrot.lane.b32.xlu0 %v1139, 112
        %v1713 = vpop.permute.xlu0 %1712
        %1714 = vrot.lane.b32.xlu0 %v1153, 112
        %v1715 = vpop.permute.xlu0 %1714
        %1716 = vrot.lane.b32.xlu0 %v1167, 112
        %v1717 = vpop.permute.xlu0 %1716
        %1718 = vrot.lane.b32.xlu0 %v1181, 112
        %v1719 = vpop.permute.xlu0 %1718
        %1720 = vrot.lane.b32.xlu0 %v1677, 112
        %v1721 = vpop.permute.xlu0 %1720
        %1722 = vrot.lane.b32.xlu0 %v1691, 112
        %v1723 = vpop.permute.xlu0 %1722
        %v1740 = vcombine.low %v1693, %v1701
        %v1742 = vunpack.c.l.s4 1983009808
        %v1743 = vunpack.c.0.s8 %v1742
        %v1744 = vlaneseq
        %v1745 = vshrl.u32 %v1744, 7
        %v1746 = vsub.s32 %v1743, %v1745
        %v1747 = vrot.slane %v1740, %v1746
        %v1748 = vcombine.low %v1697, %v1705
        %v1750 = vunpack.c.l.s4 1983009808
        %v1751 = vunpack.c.0.s8 %v1750
        %v1752 = vlaneseq
        %v1753 = vshrl.u32 %v1752, 7
        %v1754 = vsub.s32 %v1751, %v1753
        %v1755 = vrot.slane %v1748, %v1754
        %v1756 = vcombine.low %v1747, %v1755
        %v1757 = vcombine.high %v1747, %v1755
        %v1759 = vunpack.c.l.s4 1934713408
        %v1760 = vunpack.c.0.s8 %v1759
        %v1761 = vlaneseq
        %v1762 = vshrl.u32 %v1761, 7
        %v1763 = vsub.s32 %v1760, %v1762
        %v1764 = vrot.slane %v1756, %v1763
        %v1766 = vunpack.c.l.s4 1934713408
        %v1767 = vunpack.c.0.s8 %v1766
        %v1768 = vlaneseq
        %v1769 = vshrl.u32 %v1768, 7
        %v1770 = vsub.s32 %v1767, %v1769
        %v1771 = vrot.slane %v1757, %v1770
        %v1772 = vcombine.high %v1764, 0
        %v1773 = vcombine.high %v1771, 0
        %v1774 = vcombine.low %v1695, %v1703
        %v1776 = vunpack.c.l.s4 1983009808
        %v1777 = vunpack.c.0.s8 %v1776
        %v1778 = vlaneseq
        %v1779 = vshrl.u32 %v1778, 7
        %v1780 = vsub.s32 %v1777, %v1779
        %v1781 = vrot.slane %v1774, %v1780
        %v1782 = vcombine.low %v1699, %v1707
        %v1784 = vunpack.c.l.s4 1983009808
        %v1785 = vunpack.c.0.s8 %v1784
        %v1786 = vlaneseq
        %v1787 = vshrl.u32 %v1786, 7
        %v1788 = vsub.s32 %v1785, %v1787
        %v1789 = vrot.slane %v1782, %v1788
        %v1790 = vcombine.low %v1781, %v1789
        %v1791 = vcombine.high %v1781, %v1789
        %v1793 = vunpack.c.l.s4 1934713408
        %v1794 = vunpack.c.0.s8 %v1793
        %v1795 = vlaneseq
        %v1796 = vshrl.u32 %v1795, 7
        %v1797 = vsub.s32 %v1794, %v1796
        %v1798 = vrot.slane %v1790, %v1797
        %v1800 = vunpack.c.l.s4 1934713408
        %v1801 = vunpack.c.0.s8 %v1800
        %v1802 = vlaneseq
        %v1803 = vshrl.u32 %v1802, 7
        %v1804 = vsub.s32 %v1801, %v1803
        %v1805 = vrot.slane %v1791, %v1804
        %v1806 = vcombine.high %v1798, 0
        %v1807 = vcombine.high %v1805, 0
        %v1808 = vcombine.low %v1709, %v1717
        %v1810 = vunpack.c.l.s4 1983009808
        %v1811 = vunpack.c.0.s8 %v1810
        %v1812 = vlaneseq
        %v1813 = vshrl.u32 %v1812, 7
        %v1814 = vsub.s32 %v1811, %v1813
        %v1815 = vrot.slane %v1808, %v1814
        %v1816 = vcombine.low %v1713, %v1721
        %v1818 = vunpack.c.l.s4 1983009808
        %v1819 = vunpack.c.0.s8 %v1818
        %v1820 = vlaneseq
        %v1821 = vshrl.u32 %v1820, 7
        %v1822 = vsub.s32 %v1819, %v1821
        %v1823 = vrot.slane %v1816, %v1822
        %v1824 = vcombine.low %v1815, %v1823
        %v1825 = vcombine.high %v1815, %v1823
        %v1827 = vunpack.c.l.s4 1934713408
        %v1828 = vunpack.c.0.s8 %v1827
        %v1829 = vlaneseq
        %v1830 = vshrl.u32 %v1829, 7
        %v1831 = vsub.s32 %v1828, %v1830
        %v1832 = vrot.slane %v1824, %v1831
        %v1834 = vunpack.c.l.s4 1934713408
        %v1835 = vunpack.c.0.s8 %v1834
        %v1836 = vlaneseq
        %v1837 = vshrl.u32 %v1836, 7
        %v1838 = vsub.s32 %v1835, %v1837
        %v1839 = vrot.slane %v1825, %v1838
        %v1840 = vcombine.high %v1832, 0
        %v1841 = vcombine.high %v1839, 0
        %v1842 = vcombine.low %v1711, %v1719
        %v1844 = vunpack.c.l.s4 1983009808
        %v1845 = vunpack.c.0.s8 %v1844
        %v1846 = vlaneseq
        %v1847 = vshrl.u32 %v1846, 7
        %v1848 = vsub.s32 %v1845, %v1847
        %v1849 = vrot.slane %v1842, %v1848
        %v1850 = vcombine.low %v1715, %v1723
        %v1852 = vunpack.c.l.s4 1983009808
        %v1853 = vunpack.c.0.s8 %v1852
        %v1854 = vlaneseq
        %v1855 = vshrl.u32 %v1854, 7
        %v1856 = vsub.s32 %v1853, %v1855
        %v1857 = vrot.slane %v1850, %v1856
        %v1858 = vcombine.low %v1849, %v1857
        %v1859 = vcombine.high %v1849, %v1857
        %v1861 = vunpack.c.l.s4 1934713408
        %v1862 = vunpack.c.0.s8 %v1861
        %v1863 = vlaneseq
        %v1864 = vshrl.u32 %v1863, 7
        %v1865 = vsub.s32 %v1862, %v1864
        %v1866 = vrot.slane %v1858, %v1865
        %v1868 = vunpack.c.l.s4 1934713408
        %v1869 = vunpack.c.0.s8 %v1868
        %v1870 = vlaneseq
        %v1871 = vshrl.u32 %v1870, 7
        %v1872 = vsub.s32 %v1869, %v1871
        %v1873 = vrot.slane %v1859, %v1872
        %v1874 = vcombine.high %v1866, 0
        %v1875 = vcombine.high %v1873, 0
        %v1878 = vpack.i.b16 %v1798, %v1764
        %v1879 = vshrl.u32 %v1764, 16
        %v1880 = vshrl.u32 %v1798, 16
        %v1881 = vpack.i.b16 %v1880, %v1879
        %v1884 = vpack.i.b16 %v1806, %v1772
        %v1885 = vshrl.u32 %v1772, 16
        %v1886 = vshrl.u32 %v1806, 16
        %v1887 = vpack.i.b16 %v1886, %v1885
        %v1890 = vpack.i.b16 %v1805, %v1771
        %v1891 = vshrl.u32 %v1771, 16
        %v1892 = vshrl.u32 %v1805, 16
        %v1893 = vpack.i.b16 %v1892, %v1891
        %v1896 = vpack.i.b16 %v1807, %v1773
        %v1897 = vshrl.u32 %v1773, 16
        %v1898 = vshrl.u32 %v1807, 16
        %v1899 = vpack.i.b16 %v1898, %v1897
        %v1902 = vpack.i.b16 %v1866, %v1832
        %v1903 = vshrl.u32 %v1832, 16
        %v1904 = vshrl.u32 %v1866, 16
        %v1905 = vpack.i.b16 %v1904, %v1903
        %v1908 = vpack.i.b16 %v1874, %v1840
        %v1909 = vshrl.u32 %v1840, 16
        %v1910 = vshrl.u32 %v1874, 16
        %v1911 = vpack.i.b16 %v1910, %v1909
        %v1914 = vpack.i.b16 %v1873, %v1839
        %v1915 = vshrl.u32 %v1839, 16
        %v1916 = vshrl.u32 %v1873, 16
        %v1917 = vpack.i.b16 %v1916, %v1915
        %v1920 = vpack.i.b16 %v1875, %v1841
        %v1921 = vshrl.u32 %v1841, 16
        %v1922 = vshrl.u32 %v1875, 16
        %v1923 = vpack.i.b16 %v1922, %v1921
        %vm1924 = vcmask 1042432
        %vm1925 = vcmask 1046532
        %vm1926 = vmor %vm1924, %vm1925
        %v1927 = vrot.slane %v254, 5
        %v1928 = vrot.slane %v1927, 4
        %v1929 = vrot.slane %v255, 5
        %v1930 = vsel %vm1926, %v1928, %v1929
        %v1931 = vrot.slane %v258, 5
        %v1932 = vrot.slane %v1931, 4
        %v1933 = vrot.slane %v954, 5
        %v1934 = vsel %vm1926, %v1932, %v1933
        %v1935 = vrot.slane %v261, 5
        %v1936 = vrot.slane %v1935, 4
        %v1937 = vrot.slane %v956, 5
        %v1938 = vsel %vm1926, %v1936, %v1937
        %v1939 = vrot.slane %v264, 5
        %v1940 = vrot.slane %v1939, 4
        %v1941 = vrot.slane %v958, 5
        %v1942 = vsel %vm1926, %v1940, %v1941
        %v1943 = vrot.slane %v267, 5
        %v1944 = vrot.slane %v1943, 4
        %v1945 = vrot.slane %v960, 5
        %v1946 = vsel %vm1926, %v1944, %v1945
        %v1947 = vrot.slane %v270, 5
        %v1948 = vrot.slane %v1947, 4
        %v1949 = vrot.slane %v962, 5
        %v1950 = vsel %vm1926, %v1948, %v1949
        %v1951 = vrot.slane %v273, 5
        %v1952 = vrot.slane %v1951, 4
        %v1953 = vrot.slane %v964, 5
        %v1954 = vsel %vm1926, %v1952, %v1953
        %v1955 = vrot.slane %v276, 5
        %v1956 = vrot.slane %v1955, 4
        %v1957 = vrot.slane %v966, 5
        %v1958 = vsel %vm1926, %v1956, %v1957
        %v1959 = vrot.slane %v279, 5
        %v1960 = vrot.slane %v1959, 4
        %v1961 = vrot.slane %v968, 5
        %v1962 = vsel %vm1926, %v1960, %v1961
        %v1963 = vrot.slane %v282, 5
        %v1964 = vrot.slane %v1963, 4
        %v1965 = vrot.slane %v970, 5
        %v1966 = vsel %vm1926, %v1964, %v1965
        %v1967 = vrot.slane %v285, 5
        %v1968 = vrot.slane %v1967, 4
        %v1969 = vrot.slane %v972, 5
        %v1970 = vsel %vm1926, %v1968, %v1969
        %v1971 = vrot.slane %v288, 5
        %v1972 = vrot.slane %v1971, 4
        %v1973 = vrot.slane %v974, 5
        %v1974 = vsel %vm1926, %v1972, %v1973
        %v1975 = vrot.slane %v291, 5
        %v1976 = vrot.slane %v1975, 4
        %v1977 = vrot.slane %v976, 5
        %v1978 = vsel %vm1926, %v1976, %v1977
        %v1979 = vrot.slane %v294, 5
        %v1980 = vrot.slane %v1979, 4
        %v1981 = vrot.slane %v978, 5
        %v1982 = vsel %vm1926, %v1980, %v1981
        %v1983 = vrot.slane %v297, 5
        %v1984 = vrot.slane %v1983, 4
        %v1985 = vrot.slane %v980, 5
        %v1986 = vsel %vm1926, %v1984, %v1985
        %v1987 = vrot.slane %v300, 5
        %v1988 = vrot.slane %v1987, 4
        %v1989 = vrot.slane %v982, 5
        %v1990 = vsel %vm1926, %v1988, %v1989
        %v2007 = vcombine.low %v1930, %v1946
        %v2009 = vunpack.c.l.s4 1983009808
        %v2010 = vunpack.c.0.s8 %v2009
        %v2011 = vlaneseq
        %v2012 = vshrl.u32 %v2011, 7
        %v2013 = vsub.s32 %v2010, %v2012
        %v2014 = vrot.slane %v2007, %v2013
        %v2015 = vcombine.low %v1938, %v1954
        %v2017 = vunpack.c.l.s4 1983009808
        %v2018 = vunpack.c.0.s8 %v2017
        %v2019 = vlaneseq
        %v2020 = vshrl.u32 %v2019, 7
        %v2021 = vsub.s32 %v2018, %v2020
        %v2022 = vrot.slane %v2015, %v2021
        %v2023 = vcombine.low %v2014, %v2022
        %v2024 = vcombine.high %v2014, %v2022
        %v2026 = vunpack.c.l.s4 1934713408
        %v2027 = vunpack.c.0.s8 %v2026
        %v2028 = vlaneseq
        %v2029 = vshrl.u32 %v2028, 7
        %v2030 = vsub.s32 %v2027, %v2029
        %v2031 = vrot.slane %v2023, %v2030
        %v2033 = vunpack.c.l.s4 1934713408
        %v2034 = vunpack.c.0.s8 %v2033
        %v2035 = vlaneseq
        %v2036 = vshrl.u32 %v2035, 7
        %v2037 = vsub.s32 %v2034, %v2036
        %v2038 = vrot.slane %v2024, %v2037
        %v2039 = vcombine.high %v2031, 0
        %v2040 = vcombine.high %v2038, 0
        %v2041 = vcombine.low %v1934, %v1950
        %v2043 = vunpack.c.l.s4 1983009808
        %v2044 = vunpack.c.0.s8 %v2043
        %v2045 = vlaneseq
        %v2046 = vshrl.u32 %v2045, 7
        %v2047 = vsub.s32 %v2044, %v2046
        %v2048 = vrot.slane %v2041, %v2047
        %v2049 = vcombine.low %v1942, %v1958
        %v2051 = vunpack.c.l.s4 1983009808
        %v2052 = vunpack.c.0.s8 %v2051
        %v2053 = vlaneseq
        %v2054 = vshrl.u32 %v2053, 7
        %v2055 = vsub.s32 %v2052, %v2054
        %v2056 = vrot.slane %v2049, %v2055
        %v2057 = vcombine.low %v2048, %v2056
        %v2058 = vcombine.high %v2048, %v2056
        %v2060 = vunpack.c.l.s4 1934713408
        %v2061 = vunpack.c.0.s8 %v2060
        %v2062 = vlaneseq
        %v2063 = vshrl.u32 %v2062, 7
        %v2064 = vsub.s32 %v2061, %v2063
        %v2065 = vrot.slane %v2057, %v2064
        %v2067 = vunpack.c.l.s4 1934713408
        %v2068 = vunpack.c.0.s8 %v2067
        %v2069 = vlaneseq
        %v2070 = vshrl.u32 %v2069, 7
        %v2071 = vsub.s32 %v2068, %v2070
        %v2072 = vrot.slane %v2058, %v2071
        %v2073 = vcombine.high %v2065, 0
        %v2074 = vcombine.high %v2072, 0
        %v2075 = vcombine.low %v1962, %v1978
        %v2077 = vunpack.c.l.s4 1983009808
        %v2078 = vunpack.c.0.s8 %v2077
        %v2079 = vlaneseq
        %v2080 = vshrl.u32 %v2079, 7
        %v2081 = vsub.s32 %v2078, %v2080
        %v2082 = vrot.slane %v2075, %v2081
        %v2083 = vcombine.low %v1970, %v1986
        %v2085 = vunpack.c.l.s4 1983009808
        %v2086 = vunpack.c.0.s8 %v2085
        %v2087 = vlaneseq
        %v2088 = vshrl.u32 %v2087, 7
        %v2089 = vsub.s32 %v2086, %v2088
        %v2090 = vrot.slane %v2083, %v2089
        %v2091 = vcombine.low %v2082, %v2090
        %v2092 = vcombine.high %v2082, %v2090
        %v2094 = vunpack.c.l.s4 1934713408
        %v2095 = vunpack.c.0.s8 %v2094
        %v2096 = vlaneseq
        %v2097 = vshrl.u32 %v2096, 7
        %v2098 = vsub.s32 %v2095, %v2097
        %v2099 = vrot.slane %v2091, %v2098
        %v2101 = vunpack.c.l.s4 1934713408
        %v2102 = vunpack.c.0.s8 %v2101
        %v2103 = vlaneseq
        %v2104 = vshrl.u32 %v2103, 7
        %v2105 = vsub.s32 %v2102, %v2104
        %v2106 = vrot.slane %v2092, %v2105
        %v2107 = vcombine.high %v2099, 0
        %v2108 = vcombine.high %v2106, 0
        %v2109 = vcombine.low %v1966, %v1982
        %v2111 = vunpack.c.l.s4 1983009808
        %v2112 = vunpack.c.0.s8 %v2111
        %v2113 = vlaneseq
        %v2114 = vshrl.u32 %v2113, 7
        %v2115 = vsub.s32 %v2112, %v2114
        %v2116 = vrot.slane %v2109, %v2115
        %v2117 = vcombine.low %v1974, %v1990
        %v2119 = vunpack.c.l.s4 1983009808
        %v2120 = vunpack.c.0.s8 %v2119
        %v2121 = vlaneseq
        %v2122 = vshrl.u32 %v2121, 7
        %v2123 = vsub.s32 %v2120, %v2122
        %v2124 = vrot.slane %v2117, %v2123
        %v2125 = vcombine.low %v2116, %v2124
        %v2126 = vcombine.high %v2116, %v2124
        %v2128 = vunpack.c.l.s4 1934713408
        %v2129 = vunpack.c.0.s8 %v2128
        %v2130 = vlaneseq
        %v2131 = vshrl.u32 %v2130, 7
        %v2132 = vsub.s32 %v2129, %v2131
        %v2133 = vrot.slane %v2125, %v2132
        %v2135 = vunpack.c.l.s4 1934713408
        %v2136 = vunpack.c.0.s8 %v2135
        %v2137 = vlaneseq
        %v2138 = vshrl.u32 %v2137, 7
        %v2139 = vsub.s32 %v2136, %v2138
        %v2140 = vrot.slane %v2126, %v2139
        %v2141 = vcombine.high %v2133, 0
        %v2142 = vcombine.high %v2140, 0
        %v2145 = vpack.i.b16 %v2065, %v2031
        %v2146 = vshrl.u32 %v2031, 16
        %v2147 = vshrl.u32 %v2065, 16
        %v2148 = vpack.i.b16 %v2147, %v2146
        %v2151 = vpack.i.b16 %v2073, %v2039
        %v2152 = vshrl.u32 %v2039, 16
        %v2153 = vshrl.u32 %v2073, 16
        %v2154 = vpack.i.b16 %v2153, %v2152
        %v2157 = vpack.i.b16 %v2072, %v2038
        %v2158 = vshrl.u32 %v2038, 16
        %v2159 = vshrl.u32 %v2072, 16
        %v2160 = vpack.i.b16 %v2159, %v2158
        %v2163 = vpack.i.b16 %v2074, %v2040
        %v2164 = vshrl.u32 %v2040, 16
        %v2165 = vshrl.u32 %v2074, 16
        %v2166 = vpack.i.b16 %v2165, %v2164
        %v2169 = vpack.i.b16 %v2133, %v2099
        %v2170 = vshrl.u32 %v2099, 16
        %v2171 = vshrl.u32 %v2133, 16
        %v2172 = vpack.i.b16 %v2171, %v2170
        %v2175 = vpack.i.b16 %v2141, %v2107
        %v2176 = vshrl.u32 %v2107, 16
        %v2177 = vshrl.u32 %v2141, 16
        %v2178 = vpack.i.b16 %v2177, %v2176
        %v2181 = vpack.i.b16 %v2140, %v2106
        %v2182 = vshrl.u32 %v2106, 16
        %v2183 = vshrl.u32 %v2140, 16
        %v2184 = vpack.i.b16 %v2183, %v2182
        %v2187 = vpack.i.b16 %v2142, %v2108
        %v2188 = vshrl.u32 %v2108, 16
        %v2189 = vshrl.u32 %v2142, 16
        %v2190 = vpack.i.b16 %v2189, %v2188
        %v2191 = vrot.slane %v488, 5
        %v2192 = vrot.slane %v2191, 4
        %v2193 = vrot.slane %v1412, 5
        %v2194 = vsel %vm1926, %v2192, %v2193
        %2195 = vrot.lane.b32.xlu0 %v1930, 120
        %v2196 = vpop.permute.xlu0 %2195
        %2197 = vrot.lane.b32.xlu0 %v1934, 120
        %v2198 = vpop.permute.xlu0 %2197
        %2199 = vrot.lane.b32.xlu0 %v1938, 120
        %v2200 = vpop.permute.xlu0 %2199
        %2201 = vrot.lane.b32.xlu0 %v1942, 120
        %v2202 = vpop.permute.xlu0 %2201
        %2203 = vrot.lane.b32.xlu0 %v1946, 120
        %v2204 = vpop.permute.xlu0 %2203
        %2205 = vrot.lane.b32.xlu0 %v1950, 120
        %v2206 = vpop.permute.xlu0 %2205
        %2207 = vrot.lane.b32.xlu0 %v1954, 120
        %v2208 = vpop.permute.xlu0 %2207
        %2209 = vrot.lane.b32.xlu0 %v1958, 120
        %v2210 = vpop.permute.xlu0 %2209
        %2211 = vrot.lane.b32.xlu0 %v1962, 120
        %v2212 = vpop.permute.xlu0 %2211
        %2213 = vrot.lane.b32.xlu0 %v1966, 120
        %v2214 = vpop.permute.xlu0 %2213
        %2215 = vrot.lane.b32.xlu0 %v1970, 120
        %v2216 = vpop.permute.xlu0 %2215
        %2217 = vrot.lane.b32.xlu0 %v1974, 120
        %v2218 = vpop.permute.xlu0 %2217
        %2219 = vrot.lane.b32.xlu0 %v1978, 120
        %v2220 = vpop.permute.xlu0 %2219
        %2221 = vrot.lane.b32.xlu0 %v1982, 120
        %v2222 = vpop.permute.xlu0 %2221
        %2223 = vrot.lane.b32.xlu0 %v1986, 120
        %v2224 = vpop.permute.xlu0 %2223
        %2225 = vrot.lane.b32.xlu0 %v2194, 120
        %v2226 = vpop.permute.xlu0 %2225
        %v2243 = vcombine.low %v2196, %v2204
        %v2245 = vunpack.c.l.s4 1983009808
        %v2246 = vunpack.c.0.s8 %v2245
        %v2247 = vlaneseq
        %v2248 = vshrl.u32 %v2247, 7
        %v2249 = vsub.s32 %v2246, %v2248
        %v2250 = vrot.slane %v2243, %v2249
        %v2251 = vcombine.low %v2200, %v2208
        %v2253 = vunpack.c.l.s4 1983009808
        %v2254 = vunpack.c.0.s8 %v2253
        %v2255 = vlaneseq
        %v2256 = vshrl.u32 %v2255, 7
        %v2257 = vsub.s32 %v2254, %v2256
        %v2258 = vrot.slane %v2251, %v2257
        %v2259 = vcombine.low %v2250, %v2258
        %v2260 = vcombine.high %v2250, %v2258
        %v2262 = vunpack.c.l.s4 1934713408
        %v2263 = vunpack.c.0.s8 %v2262
        %v2264 = vlaneseq
        %v2265 = vshrl.u32 %v2264, 7
        %v2266 = vsub.s32 %v2263, %v2265
        %v2267 = vrot.slane %v2259, %v2266
        %v2269 = vunpack.c.l.s4 1934713408
        %v2270 = vunpack.c.0.s8 %v2269
        %v2271 = vlaneseq
        %v2272 = vshrl.u32 %v2271, 7
        %v2273 = vsub.s32 %v2270, %v2272
        %v2274 = vrot.slane %v2260, %v2273
        %v2275 = vcombine.high %v2267, 0
        %v2276 = vcombine.high %v2274, 0
        %v2277 = vcombine.low %v2198, %v2206
        %v2279 = vunpack.c.l.s4 1983009808
        %v2280 = vunpack.c.0.s8 %v2279
        %v2281 = vlaneseq
        %v2282 = vshrl.u32 %v2281, 7
        %v2283 = vsub.s32 %v2280, %v2282
        %v2284 = vrot.slane %v2277, %v2283
        %v2285 = vcombine.low %v2202, %v2210
        %v2287 = vunpack.c.l.s4 1983009808
        %v2288 = vunpack.c.0.s8 %v2287
        %v2289 = vlaneseq
        %v2290 = vshrl.u32 %v2289, 7
        %v2291 = vsub.s32 %v2288, %v2290
        %v2292 = vrot.slane %v2285, %v2291
        %v2293 = vcombine.low %v2284, %v2292
        %v2294 = vcombine.high %v2284, %v2292
        %v2296 = vunpack.c.l.s4 1934713408
        %v2297 = vunpack.c.0.s8 %v2296
        %v2298 = vlaneseq
        %v2299 = vshrl.u32 %v2298, 7
        %v2300 = vsub.s32 %v2297, %v2299
        %v2301 = vrot.slane %v2293, %v2300
        %v2303 = vunpack.c.l.s4 1934713408
        %v2304 = vunpack.c.0.s8 %v2303
        %v2305 = vlaneseq
        %v2306 = vshrl.u32 %v2305, 7
        %v2307 = vsub.s32 %v2304, %v2306
        %v2308 = vrot.slane %v2294, %v2307
        %v2309 = vcombine.high %v2301, 0
        %v2310 = vcombine.high %v2308, 0
        %v2311 = vcombine.low %v2212, %v2220
        %v2313 = vunpack.c.l.s4 1983009808
        %v2314 = vunpack.c.0.s8 %v2313
        %v2315 = vlaneseq
        %v2316 = vshrl.u32 %v2315, 7
        %v2317 = vsub.s32 %v2314, %v2316
        %v2318 = vrot.slane %v2311, %v2317
        %v2319 = vcombine.low %v2216, %v2224
        %v2321 = vunpack.c.l.s4 1983009808
        %v2322 = vunpack.c.0.s8 %v2321
        %v2323 = vlaneseq
        %v2324 = vshrl.u32 %v2323, 7
        %v2325 = vsub.s32 %v2322, %v2324
        %v2326 = vrot.slane %v2319, %v2325
        %v2327 = vcombine.low %v2318, %v2326
        %v2328 = vcombine.high %v2318, %v2326
        %v2330 = vunpack.c.l.s4 1934713408
        %v2331 = vunpack.c.0.s8 %v2330
        %v2332 = vlaneseq
        %v2333 = vshrl.u32 %v2332, 7
        %v2334 = vsub.s32 %v2331, %v2333
        %v2335 = vrot.slane %v2327, %v2334
        %v2337 = vunpack.c.l.s4 1934713408
        %v2338 = vunpack.c.0.s8 %v2337
        %v2339 = vlaneseq
        %v2340 = vshrl.u32 %v2339, 7
        %v2341 = vsub.s32 %v2338, %v2340
        %v2342 = vrot.slane %v2328, %v2341
        %v2343 = vcombine.high %v2335, 0
        %v2344 = vcombine.high %v2342, 0
        %v2345 = vcombine.low %v2214, %v2222
        %v2347 = vunpack.c.l.s4 1983009808
        %v2348 = vunpack.c.0.s8 %v2347
        %v2349 = vlaneseq
        %v2350 = vshrl.u32 %v2349, 7
        %v2351 = vsub.s32 %v2348, %v2350
        %v2352 = vrot.slane %v2345, %v2351
        %v2353 = vcombine.low %v2218, %v2226
        %v2355 = vunpack.c.l.s4 1983009808
        %v2356 = vunpack.c.0.s8 %v2355
        %v2357 = vlaneseq
        %v2358 = vshrl.u32 %v2357, 7
        %v2359 = vsub.s32 %v2356, %v2358
        %v2360 = vrot.slane %v2353, %v2359
        %v2361 = vcombine.low %v2352, %v2360
        %v2362 = vcombine.high %v2352, %v2360
        %v2364 = vunpack.c.l.s4 1934713408
        %v2365 = vunpack.c.0.s8 %v2364
        %v2366 = vlaneseq
        %v2367 = vshrl.u32 %v2366, 7
        %v2368 = vsub.s32 %v2365, %v2367
        %v2369 = vrot.slane %v2361, %v2368
        %v2371 = vunpack.c.l.s4 1934713408
        %v2372 = vunpack.c.0.s8 %v2371
        %v2373 = vlaneseq
        %v2374 = vshrl.u32 %v2373, 7
        %v2375 = vsub.s32 %v2372, %v2374
        %v2376 = vrot.slane %v2362, %v2375
        %v2377 = vcombine.high %v2369, 0
        %v2378 = vcombine.high %v2376, 0
        %v2381 = vpack.i.b16 %v2301, %v2267
        %v2382 = vshrl.u32 %v2267, 16
        %v2383 = vshrl.u32 %v2301, 16
        %v2384 = vpack.i.b16 %v2383, %v2382
        %v2387 = vpack.i.b16 %v2309, %v2275
        %v2388 = vshrl.u32 %v2275, 16
        %v2389 = vshrl.u32 %v2309, 16
        %v2390 = vpack.i.b16 %v2389, %v2388
        %v2393 = vpack.i.b16 %v2308, %v2274
        %v2394 = vshrl.u32 %v2274, 16
        %v2395 = vshrl.u32 %v2308, 16
        %v2396 = vpack.i.b16 %v2395, %v2394
        %v2399 = vpack.i.b16 %v2310, %v2276
        %v2400 = vshrl.u32 %v2276, 16
        %v2401 = vshrl.u32 %v2310, 16
        %v2402 = vpack.i.b16 %v2401, %v2400
        %v2405 = vpack.i.b16 %v2369, %v2335
        %v2406 = vshrl.u32 %v2335, 16
        %v2407 = vshrl.u32 %v2369, 16
        %v2408 = vpack.i.b16 %v2407, %v2406
        %v2411 = vpack.i.b16 %v2377, %v2343
        %v2412 = vshrl.u32 %v2343, 16
        %v2413 = vshrl.u32 %v2377, 16
        %v2414 = vpack.i.b16 %v2413, %v2412
        %v2417 = vpack.i.b16 %v2376, %v2342
        %v2418 = vshrl.u32 %v2342, 16
        %v2419 = vshrl.u32 %v2376, 16
        %v2420 = vpack.i.b16 %v2419, %v2418
        %v2423 = vpack.i.b16 %v2378, %v2344
        %v2424 = vshrl.u32 %v2344, 16
        %v2425 = vshrl.u32 %v2378, 16
        %v2426 = vpack.i.b16 %v2425, %v2424
        %v2427 = vrot.slane %v720, 5
        %v2428 = vrot.slane %v2427, 4
        %v2429 = vrot.slane %v1661, 5
        %v2430 = vsel %vm1926, %v2428, %v2429
        %v2431 = vrot.slane %v722, 5
        %v2432 = vrot.slane %v2431, 4
        %v2433 = vrot.slane %v1663, 5
        %v2434 = vsel %vm1926, %v2432, %v2433
        %2435 = vrot.lane.b32.xlu0 %v1930, 112
        %v2436 = vpop.permute.xlu0 %2435
        %2437 = vrot.lane.b32.xlu0 %v1934, 112
        %v2438 = vpop.permute.xlu0 %2437
        %2439 = vrot.lane.b32.xlu0 %v1938, 112
        %v2440 = vpop.permute.xlu0 %2439
        %2441 = vrot.lane.b32.xlu0 %v1942, 112
        %v2442 = vpop.permute.xlu0 %2441
        %2443 = vrot.lane.b32.xlu0 %v1946, 112
        %v2444 = vpop.permute.xlu0 %2443
        %2445 = vrot.lane.b32.xlu0 %v1950, 112
        %v2446 = vpop.permute.xlu0 %2445
        %2447 = vrot.lane.b32.xlu0 %v1954, 112
        %v2448 = vpop.permute.xlu0 %2447
        %2449 = vrot.lane.b32.xlu0 %v1958, 112
        %v2450 = vpop.permute.xlu0 %2449
        %2451 = vrot.lane.b32.xlu0 %v1962, 112
        %v2452 = vpop.permute.xlu0 %2451
        %2453 = vrot.lane.b32.xlu0 %v1966, 112
        %v2454 = vpop.permute.xlu0 %2453
        %2455 = vrot.lane.b32.xlu0 %v1970, 112
        %v2456 = vpop.permute.xlu0 %2455
        %2457 = vrot.lane.b32.xlu0 %v1974, 112
        %v2458 = vpop.permute.xlu0 %2457
        %2459 = vrot.lane.b32.xlu0 %v1978, 112
        %v2460 = vpop.permute.xlu0 %2459
        %2461 = vrot.lane.b32.xlu0 %v1982, 112
        %v2462 = vpop.permute.xlu0 %2461
        %2463 = vrot.lane.b32.xlu0 %v2430, 112
        %v2464 = vpop.permute.xlu0 %2463
        %2465 = vrot.lane.b32.xlu0 %v2434, 112
        %v2466 = vpop.permute.xlu0 %2465
        %v2483 = vcombine.low %v2436, %v2444
        %v2485 = vunpack.c.l.s4 1983009808
        %v2486 = vunpack.c.0.s8 %v2485
        %v2487 = vlaneseq
        %v2488 = vshrl.u32 %v2487, 7
        %v2489 = vsub.s32 %v2486, %v2488
        %v2490 = vrot.slane %v2483, %v2489
        %v2491 = vcombine.low %v2440, %v2448
        %v2493 = vunpack.c.l.s4 1983009808
        %v2494 = vunpack.c.0.s8 %v2493
        %v2495 = vlaneseq
        %v2496 = vshrl.u32 %v2495, 7
        %v2497 = vsub.s32 %v2494, %v2496
        %v2498 = vrot.slane %v2491, %v2497
        %v2499 = vcombine.low %v2490, %v2498
        %v2500 = vcombine.high %v2490, %v2498
        %v2502 = vunpack.c.l.s4 1934713408
        %v2503 = vunpack.c.0.s8 %v2502
        %v2504 = vlaneseq
        %v2505 = vshrl.u32 %v2504, 7
        %v2506 = vsub.s32 %v2503, %v2505
        %v2507 = vrot.slane %v2499, %v2506
        %v2509 = vunpack.c.l.s4 1934713408
        %v2510 = vunpack.c.0.s8 %v2509
        %v2511 = vlaneseq
        %v2512 = vshrl.u32 %v2511, 7
        %v2513 = vsub.s32 %v2510, %v2512
        %v2514 = vrot.slane %v2500, %v2513
        %v2515 = vcombine.high %v2507, 0
        %v2516 = vcombine.high %v2514, 0
        %v2517 = vcombine.low %v2438, %v2446
        %v2519 = vunpack.c.l.s4 1983009808
        %v2520 = vunpack.c.0.s8 %v2519
        %v2521 = vlaneseq
        %v2522 = vshrl.u32 %v2521, 7
        %v2523 = vsub.s32 %v2520, %v2522
        %v2524 = vrot.slane %v2517, %v2523
        %v2525 = vcombine.low %v2442, %v2450
        %v2527 = vunpack.c.l.s4 1983009808
        %v2528 = vunpack.c.0.s8 %v2527
        %v2529 = vlaneseq
        %v2530 = vshrl.u32 %v2529, 7
        %v2531 = vsub.s32 %v2528, %v2530
        %v2532 = vrot.slane %v2525, %v2531
        %v2533 = vcombine.low %v2524, %v2532
        %v2534 = vcombine.high %v2524, %v2532
        %v2536 = vunpack.c.l.s4 1934713408
        %v2537 = vunpack.c.0.s8 %v2536
        %v2538 = vlaneseq
        %v2539 = vshrl.u32 %v2538, 7
        %v2540 = vsub.s32 %v2537, %v2539
        %v2541 = vrot.slane %v2533, %v2540
        %v2543 = vunpack.c.l.s4 1934713408
        %v2544 = vunpack.c.0.s8 %v2543
        %v2545 = vlaneseq
        %v2546 = vshrl.u32 %v2545, 7
        %v2547 = vsub.s32 %v2544, %v2546
        %v2548 = vrot.slane %v2534, %v2547
        %v2549 = vcombine.high %v2541, 0
        %v2550 = vcombine.high %v2548, 0
        %v2551 = vcombine.low %v2452, %v2460
        %v2553 = vunpack.c.l.s4 1983009808
        %v2554 = vunpack.c.0.s8 %v2553
        %v2555 = vlaneseq
        %v2556 = vshrl.u32 %v2555, 7
        %v2557 = vsub.s32 %v2554, %v2556
        %v2558 = vrot.slane %v2551, %v2557
        %v2559 = vcombine.low %v2456, %v2464
        %v2561 = vunpack.c.l.s4 1983009808
        %v2562 = vunpack.c.0.s8 %v2561
        %v2563 = vlaneseq
        %v2564 = vshrl.u32 %v2563, 7
        %v2565 = vsub.s32 %v2562, %v2564
        %v2566 = vrot.slane %v2559, %v2565
        %v2567 = vcombine.low %v2558, %v2566
        %v2568 = vcombine.high %v2558, %v2566
        %v2570 = vunpack.c.l.s4 1934713408
        %v2571 = vunpack.c.0.s8 %v2570
        %v2572 = vlaneseq
        %v2573 = vshrl.u32 %v2572, 7
        %v2574 = vsub.s32 %v2571, %v2573
        %v2575 = vrot.slane %v2567, %v2574
        %v2577 = vunpack.c.l.s4 1934713408
        %v2578 = vunpack.c.0.s8 %v2577
        %v2579 = vlaneseq
        %v2580 = vshrl.u32 %v2579, 7
        %v2581 = vsub.s32 %v2578, %v2580
        %v2582 = vrot.slane %v2568, %v2581
        %v2583 = vcombine.high %v2575, 0
        %v2584 = vcombine.high %v2582, 0
        %v2585 = vcombine.low %v2454, %v2462
        %v2587 = vunpack.c.l.s4 1983009808
        %v2588 = vunpack.c.0.s8 %v2587
        %v2589 = vlaneseq
        %v2590 = vshrl.u32 %v2589, 7
        %v2591 = vsub.s32 %v2588, %v2590
        %v2592 = vrot.slane %v2585, %v2591
        %v2593 = vcombine.low %v2458, %v2466
        %v2595 = vunpack.c.l.s4 1983009808
        %v2596 = vunpack.c.0.s8 %v2595
        %v2597 = vlaneseq
        %v2598 = vshrl.u32 %v2597, 7
        %v2599 = vsub.s32 %v2596, %v2598
        %v2600 = vrot.slane %v2593, %v2599
        %v2601 = vcombine.low %v2592, %v2600
        %v2602 = vcombine.high %v2592, %v2600
        %v2604 = vunpack.c.l.s4 1934713408
        %v2605 = vunpack.c.0.s8 %v2604
        %v2606 = vlaneseq
        %v2607 = vshrl.u32 %v2606, 7
        %v2608 = vsub.s32 %v2605, %v2607
        %v2609 = vrot.slane %v2601, %v2608
        %v2611 = vunpack.c.l.s4 1934713408
        %v2612 = vunpack.c.0.s8 %v2611
        %v2613 = vlaneseq
        %v2614 = vshrl.u32 %v2613, 7
        %v2615 = vsub.s32 %v2612, %v2614
        %v2616 = vrot.slane %v2602, %v2615
        %v2617 = vcombine.high %v2609, 0
        %v2618 = vcombine.high %v2616, 0
        %v2621 = vpack.i.b16 %v2541, %v2507
        %v2622 = vshrl.u32 %v2507, 16
        %v2623 = vshrl.u32 %v2541, 16
        %v2624 = vpack.i.b16 %v2623, %v2622
        %v2627 = vpack.i.b16 %v2549, %v2515
        %v2628 = vshrl.u32 %v2515, 16
        %v2629 = vshrl.u32 %v2549, 16
        %v2630 = vpack.i.b16 %v2629, %v2628
        %v2633 = vpack.i.b16 %v2548, %v2514
        %v2634 = vshrl.u32 %v2514, 16
        %v2635 = vshrl.u32 %v2548, 16
        %v2636 = vpack.i.b16 %v2635, %v2634
        %v2639 = vpack.i.b16 %v2550, %v2516
        %v2640 = vshrl.u32 %v2516, 16
        %v2641 = vshrl.u32 %v2550, 16
        %v2642 = vpack.i.b16 %v2641, %v2640
        %v2645 = vpack.i.b16 %v2609, %v2575
        %v2646 = vshrl.u32 %v2575, 16
        %v2647 = vshrl.u32 %v2609, 16
        %v2648 = vpack.i.b16 %v2647, %v2646
        %v2651 = vpack.i.b16 %v2617, %v2583
        %v2652 = vshrl.u32 %v2583, 16
        %v2653 = vshrl.u32 %v2617, 16
        %v2654 = vpack.i.b16 %v2653, %v2652
        %v2657 = vpack.i.b16 %v2616, %v2582
        %v2658 = vshrl.u32 %v2582, 16
        %v2659 = vshrl.u32 %v2616, 16
        %v2660 = vpack.i.b16 %v2659, %v2658
        %v2663 = vpack.i.b16 %v2618, %v2584
        %v2664 = vshrl.u32 %v2584, 16
        %v2665 = vshrl.u32 %v2618, 16
        %v2666 = vpack.i.b16 %v2665, %v2664
        %v2667 = vunpack.c.l.b16 %v440
        %v2668 = vunpack.c.l.b16 %v464
        %v2669 = vunpack.c.l.b16 %v443
        %v2670 = vunpack.c.l.b16 %v467
        %v2671 = vunpack.c.l.b16 %v446
        %v2672 = vunpack.c.l.b16 %v470
        %v2673 = vunpack.c.l.b16 %v449
        %v2674 = vunpack.c.l.b16 %v473
        %v2675 = vunpack.c.l.b16 %v452
        %v2676 = vunpack.c.l.b16 %v476
        %v2677 = vunpack.c.l.b16 %v455
        %v2678 = vunpack.c.l.b16 %v479
        %v2679 = vunpack.c.l.b16 %v458
        %v2680 = vunpack.c.l.b16 %v482
        %v2681 = vunpack.c.l.b16 %v461
        %v2682 = vunpack.c.l.b16 %v485
        %v2683 = vpack.c.b16 %v2668, %v2667
        %v2684 = vpack.c.b16 %v2670, %v2669
        %v2685 = vpack.c.b16 %v2672, %v2671
        %v2686 = vpack.c.b16 %v2674, %v2673
        %v2687 = vpack.c.b16 %v2676, %v2675
        %v2688 = vpack.c.b16 %v2678, %v2677
        %v2689 = vpack.c.b16 %v2680, %v2679
        %v2690 = vpack.c.b16 %v2682, %v2681
        %v2691 = vunpack.c.l.b16 %v672
        %v2692 = vunpack.c.l.b16 %v696
        %v2693 = vunpack.c.l.b16 %v675
        %v2694 = vunpack.c.l.b16 %v699
        %v2695 = vunpack.c.l.b16 %v678
        %v2696 = vunpack.c.l.b16 %v702
        %v2697 = vunpack.c.l.b16 %v681
        %v2698 = vunpack.c.l.b16 %v705
        %v2699 = vunpack.c.l.b16 %v684
        %v2700 = vunpack.c.l.b16 %v708
        %v2701 = vunpack.c.l.b16 %v687
        %v2702 = vunpack.c.l.b16 %v711
        %v2703 = vunpack.c.l.b16 %v690
        %v2704 = vunpack.c.l.b16 %v714
        %v2705 = vunpack.c.l.b16 %v693
        %v2706 = vunpack.c.l.b16 %v717
        %v2707 = vpack.c.b16 %v2692, %v2691
        %v2708 = vpack.c.b16 %v2694, %v2693
        %v2709 = vpack.c.b16 %v2696, %v2695
        %v2710 = vpack.c.b16 %v2698, %v2697
        %v2711 = vpack.c.b16 %v2700, %v2699
        %v2712 = vpack.c.b16 %v2702, %v2701
        %v2713 = vpack.c.b16 %v2704, %v2703
        %v2714 = vpack.c.b16 %v2706, %v2705
        %2715 = vrot.lane.b32.xlu0 %v2707, 8
        %v2716 = vpop.permute.xlu0 %2715
        %2717 = vrot.lane.b32.xlu0 %v2708, 8
        %v2718 = vpop.permute.xlu0 %2717
        %2719 = vrot.lane.b32.xlu0 %v2709, 8
        %v2720 = vpop.permute.xlu0 %2719
        %2721 = vrot.lane.b32.xlu0 %v2710, 8
        %v2722 = vpop.permute.xlu0 %2721
        %2723 = vrot.lane.b32.xlu0 %v2711, 8
        %v2724 = vpop.permute.xlu0 %2723
        %2725 = vrot.lane.b32.xlu0 %v2712, 8
        %v2726 = vpop.permute.xlu0 %2725
        %2727 = vrot.lane.b32.xlu0 %v2713, 8
        %v2728 = vpop.permute.xlu0 %2727
        %2729 = vrot.lane.b32.xlu0 %v2714, 8
        %v2730 = vpop.permute.xlu0 %2729
        %v2731 = vunpack.c.l.b16 %v906
        %v2732 = vunpack.c.l.b16 %v930
        %v2733 = vunpack.c.l.b16 %v909
        %v2734 = vunpack.c.l.b16 %v933
        %v2735 = vunpack.c.l.b16 %v912
        %v2736 = vunpack.c.l.b16 %v936
        %v2737 = vunpack.c.l.b16 %v915
        %v2738 = vunpack.c.l.b16 %v939
        %v2739 = vunpack.c.l.b16 %v918
        %v2740 = vunpack.c.l.b16 %v942
        %v2741 = vunpack.c.l.b16 %v921
        %v2742 = vunpack.c.l.b16 %v945
        %v2743 = vunpack.c.l.b16 %v924
        %v2744 = vunpack.c.l.b16 %v948
        %v2745 = vunpack.c.l.b16 %v927
        %v2746 = vunpack.c.l.b16 %v951
        %v2747 = vpack.c.b16 %v2732, %v2731
        %v2748 = vpack.c.b16 %v2734, %v2733
        %v2749 = vpack.c.b16 %v2736, %v2735
        %v2750 = vpack.c.b16 %v2738, %v2737
        %v2751 = vpack.c.b16 %v2740, %v2739
        %v2752 = vpack.c.b16 %v2742, %v2741
        %v2753 = vpack.c.b16 %v2744, %v2743
        %v2754 = vpack.c.b16 %v2746, %v2745
        %2755 = vrot.lane.b32.xlu0 %v2747, 16
        %v2756 = vpop.permute.xlu0 %2755
        %2757 = vrot.lane.b32.xlu0 %v2748, 16
        %v2758 = vpop.permute.xlu0 %2757
        %2759 = vrot.lane.b32.xlu0 %v2749, 16
        %v2760 = vpop.permute.xlu0 %2759
        %2761 = vrot.lane.b32.xlu0 %v2750, 16
        %v2762 = vpop.permute.xlu0 %2761
        %2763 = vrot.lane.b32.xlu0 %v2751, 16
        %v2764 = vpop.permute.xlu0 %2763
        %2765 = vrot.lane.b32.xlu0 %v2752, 16
        %v2766 = vpop.permute.xlu0 %2765
        %2767 = vrot.lane.b32.xlu0 %v2753, 16
        %v2768 = vpop.permute.xlu0 %2767
        %2769 = vrot.lane.b32.xlu0 %v2754, 16
        %v2770 = vpop.permute.xlu0 %2769
        %v2771 = vunpack.c.l.b16 %v1364
        %v2772 = vunpack.c.l.b16 %v1388
        %v2773 = vunpack.c.l.b16 %v1367
        %v2774 = vunpack.c.l.b16 %v1391
        %v2775 = vunpack.c.l.b16 %v1370
        %v2776 = vunpack.c.l.b16 %v1394
        %v2777 = vunpack.c.l.b16 %v1373
        %v2778 = vunpack.c.l.b16 %v1397
        %v2779 = vunpack.c.l.b16 %v1376
        %v2780 = vunpack.c.l.b16 %v1400
        %v2781 = vunpack.c.l.b16 %v1379
        %v2782 = vunpack.c.l.b16 %v1403
        %v2783 = vunpack.c.l.b16 %v1382
        %v2784 = vunpack.c.l.b16 %v1406
        %v2785 = vunpack.c.l.b16 %v1385
        %v2786 = vunpack.c.l.b16 %v1409
        %v2787 = vpack.c.b16 %v2772, %v2771
        %v2788 = vpack.c.b16 %v2774, %v2773
        %v2789 = vpack.c.b16 %v2776, %v2775
        %v2790 = vpack.c.b16 %v2778, %v2777
        %v2791 = vpack.c.b16 %v2780, %v2779
        %v2792 = vpack.c.b16 %v2782, %v2781
        %v2793 = vpack.c.b16 %v2784, %v2783
        %v2794 = vpack.c.b16 %v2786, %v2785
        %2795 = vrot.lane.b32.xlu0 %v2787, 24
        %v2796 = vpop.permute.xlu0 %2795
        %2797 = vrot.lane.b32.xlu0 %v2788, 24
        %v2798 = vpop.permute.xlu0 %2797
        %2799 = vrot.lane.b32.xlu0 %v2789, 24
        %v2800 = vpop.permute.xlu0 %2799
        %2801 = vrot.lane.b32.xlu0 %v2790, 24
        %v2802 = vpop.permute.xlu0 %2801
        %2803 = vrot.lane.b32.xlu0 %v2791, 24
        %v2804 = vpop.permute.xlu0 %2803
        %2805 = vrot.lane.b32.xlu0 %v2792, 24
        %v2806 = vpop.permute.xlu0 %2805
        %2807 = vrot.lane.b32.xlu0 %v2793, 24
        %v2808 = vpop.permute.xlu0 %2807
        %2809 = vrot.lane.b32.xlu0 %v2794, 24
        %v2810 = vpop.permute.xlu0 %2809
        %v2811 = vunpack.c.l.b16 %v1613
        %v2812 = vunpack.c.l.b16 %v1637
        %v2813 = vunpack.c.l.b16 %v1616
        %v2814 = vunpack.c.l.b16 %v1640
        %v2815 = vunpack.c.l.b16 %v1619
        %v2816 = vunpack.c.l.b16 %v1643
        %v2817 = vunpack.c.l.b16 %v1622
        %v2818 = vunpack.c.l.b16 %v1646
        %v2819 = vunpack.c.l.b16 %v1625
        %v2820 = vunpack.c.l.b16 %v1649
        %v2821 = vunpack.c.l.b16 %v1628
        %v2822 = vunpack.c.l.b16 %v1652
        %v2823 = vunpack.c.l.b16 %v1631
        %v2824 = vunpack.c.l.b16 %v1655
        %v2825 = vunpack.c.l.b16 %v1634
        %v2826 = vunpack.c.l.b16 %v1658
        %v2827 = vpack.c.b16 %v2812, %v2811
        %v2828 = vpack.c.b16 %v2814, %v2813
        %v2829 = vpack.c.b16 %v2816, %v2815
        %v2830 = vpack.c.b16 %v2818, %v2817
        %v2831 = vpack.c.b16 %v2820, %v2819
        %v2832 = vpack.c.b16 %v2822, %v2821
        %v2833 = vpack.c.b16 %v2824, %v2823
        %v2834 = vpack.c.b16 %v2826, %v2825
        %2835 = vrot.lane.b32.xlu0 %v2827, 32
        %v2836 = vpop.permute.xlu0 %2835
        %2837 = vrot.lane.b32.xlu0 %v2828, 32
        %v2838 = vpop.permute.xlu0 %2837
        %2839 = vrot.lane.b32.xlu0 %v2829, 32
        %v2840 = vpop.permute.xlu0 %2839
        %2841 = vrot.lane.b32.xlu0 %v2830, 32
        %v2842 = vpop.permute.xlu0 %2841
        %2843 = vrot.lane.b32.xlu0 %v2831, 32
        %v2844 = vpop.permute.xlu0 %2843
        %2845 = vrot.lane.b32.xlu0 %v2832, 32
        %v2846 = vpop.permute.xlu0 %2845
        %2847 = vrot.lane.b32.xlu0 %v2833, 32
        %v2848 = vpop.permute.xlu0 %2847
        %2849 = vrot.lane.b32.xlu0 %v2834, 32
        %v2850 = vpop.permute.xlu0 %2849
        %v2851 = vunpack.c.l.b16 %v1878
        %v2852 = vunpack.c.l.b16 %v1902
        %v2853 = vunpack.c.l.b16 %v1881
        %v2854 = vunpack.c.l.b16 %v1905
        %v2855 = vunpack.c.l.b16 %v1884
        %v2856 = vunpack.c.l.b16 %v1908
        %v2857 = vunpack.c.l.b16 %v1887
        %v2858 = vunpack.c.l.b16 %v1911
        %v2859 = vunpack.c.l.b16 %v1890
        %v2860 = vunpack.c.l.b16 %v1914
        %v2861 = vunpack.c.l.b16 %v1893
        %v2862 = vunpack.c.l.b16 %v1917
        %v2863 = vunpack.c.l.b16 %v1896
        %v2864 = vunpack.c.l.b16 %v1920
        %v2865 = vunpack.c.l.b16 %v1899
        %v2866 = vunpack.c.l.b16 %v1923
        %v2867 = vpack.c.b16 %v2852, %v2851
        %v2868 = vpack.c.b16 %v2854, %v2853
        %v2869 = vpack.c.b16 %v2856, %v2855
        %v2870 = vpack.c.b16 %v2858, %v2857
        %v2871 = vpack.c.b16 %v2860, %v2859
        %v2872 = vpack.c.b16 %v2862, %v2861
        %v2873 = vpack.c.b16 %v2864, %v2863
        %v2874 = vpack.c.b16 %v2866, %v2865
        %2875 = vrot.lane.b32.xlu0 %v2867, 40
        %v2876 = vpop.permute.xlu0 %2875
        %2877 = vrot.lane.b32.xlu0 %v2868, 40
        %v2878 = vpop.permute.xlu0 %2877
        %2879 = vrot.lane.b32.xlu0 %v2869, 40
        %v2880 = vpop.permute.xlu0 %2879
        %2881 = vrot.lane.b32.xlu0 %v2870, 40
        %v2882 = vpop.permute.xlu0 %2881
        %2883 = vrot.lane.b32.xlu0 %v2871, 40
        %v2884 = vpop.permute.xlu0 %2883
        %2885 = vrot.lane.b32.xlu0 %v2872, 40
        %v2886 = vpop.permute.xlu0 %2885
        %2887 = vrot.lane.b32.xlu0 %v2873, 40
        %v2888 = vpop.permute.xlu0 %2887
        %2889 = vrot.lane.b32.xlu0 %v2874, 40
        %v2890 = vpop.permute.xlu0 %2889
        %v2891 = vunpack.c.l.b16 %v2145
        %v2892 = vunpack.c.l.b16 %v2169
        %v2893 = vunpack.c.l.b16 %v2148
        %v2894 = vunpack.c.l.b16 %v2172
        %v2895 = vunpack.c.l.b16 %v2151
        %v2896 = vunpack.c.l.b16 %v2175
        %v2897 = vunpack.c.l.b16 %v2154
        %v2898 = vunpack.c.l.b16 %v2178
        %v2899 = vunpack.c.l.b16 %v2157
        %v2900 = vunpack.c.l.b16 %v2181
        %v2901 = vunpack.c.l.b16 %v2160
        %v2902 = vunpack.c.l.b16 %v2184
        %v2903 = vunpack.c.l.b16 %v2163
        %v2904 = vunpack.c.l.b16 %v2187
        %v2905 = vunpack.c.l.b16 %v2166
        %v2906 = vunpack.c.l.b16 %v2190
        %v2907 = vpack.c.b16 %v2892, %v2891
        %v2908 = vpack.c.b16 %v2894, %v2893
        %v2909 = vpack.c.b16 %v2896, %v2895
        %v2910 = vpack.c.b16 %v2898, %v2897
        %v2911 = vpack.c.b16 %v2900, %v2899
        %v2912 = vpack.c.b16 %v2902, %v2901
        %v2913 = vpack.c.b16 %v2904, %v2903
        %v2914 = vpack.c.b16 %v2906, %v2905
        %2915 = vrot.lane.b32.xlu0 %v2907, 48
        %v2916 = vpop.permute.xlu0 %2915
        %2917 = vrot.lane.b32.xlu0 %v2908, 48
        %v2918 = vpop.permute.xlu0 %2917
        %2919 = vrot.lane.b32.xlu0 %v2909, 48
        %v2920 = vpop.permute.xlu0 %2919
        %2921 = vrot.lane.b32.xlu0 %v2910, 48
        %v2922 = vpop.permute.xlu0 %2921
        %2923 = vrot.lane.b32.xlu0 %v2911, 48
        %v2924 = vpop.permute.xlu0 %2923
        %2925 = vrot.lane.b32.xlu0 %v2912, 48
        %v2926 = vpop.permute.xlu0 %2925
        %2927 = vrot.lane.b32.xlu0 %v2913, 48
        %v2928 = vpop.permute.xlu0 %2927
        %2929 = vrot.lane.b32.xlu0 %v2914, 48
        %v2930 = vpop.permute.xlu0 %2929
        %v2931 = vunpack.c.l.b16 %v2381
        %v2932 = vunpack.c.l.b16 %v2405
        %v2933 = vunpack.c.l.b16 %v2384
        %v2934 = vunpack.c.l.b16 %v2408
        %v2935 = vunpack.c.l.b16 %v2387
        %v2936 = vunpack.c.l.b16 %v2411
        %v2937 = vunpack.c.l.b16 %v2390
        %v2938 = vunpack.c.l.b16 %v2414
        %v2939 = vunpack.c.l.b16 %v2393
        %v2940 = vunpack.c.l.b16 %v2417
        %v2941 = vunpack.c.l.b16 %v2396
        %v2942 = vunpack.c.l.b16 %v2420
        %v2943 = vunpack.c.l.b16 %v2399
        %v2944 = vunpack.c.l.b16 %v2423
        %v2945 = vunpack.c.l.b16 %v2402
        %v2946 = vunpack.c.l.b16 %v2426
        %v2947 = vpack.c.b16 %v2932, %v2931
        %v2948 = vpack.c.b16 %v2934, %v2933
        %v2949 = vpack.c.b16 %v2936, %v2935
        %v2950 = vpack.c.b16 %v2938, %v2937
        %v2951 = vpack.c.b16 %v2940, %v2939
        %v2952 = vpack.c.b16 %v2942, %v2941
        %v2953 = vpack.c.b16 %v2944, %v2943
        %v2954 = vpack.c.b16 %v2946, %v2945
        %2955 = vrot.lane.b32.xlu0 %v2947, 56
        %v2956 = vpop.permute.xlu0 %2955
        %2957 = vrot.lane.b32.xlu0 %v2948, 56
        %v2958 = vpop.permute.xlu0 %2957
        %2959 = vrot.lane.b32.xlu0 %v2949, 56
        %v2960 = vpop.permute.xlu0 %2959
        %2961 = vrot.lane.b32.xlu0 %v2950, 56
        %v2962 = vpop.permute.xlu0 %2961
        %2963 = vrot.lane.b32.xlu0 %v2951, 56
        %v2964 = vpop.permute.xlu0 %2963
        %2965 = vrot.lane.b32.xlu0 %v2952, 56
        %v2966 = vpop.permute.xlu0 %2965
        %2967 = vrot.lane.b32.xlu0 %v2953, 56
        %v2968 = vpop.permute.xlu0 %2967
        %2969 = vrot.lane.b32.xlu0 %v2954, 56
        %v2970 = vpop.permute.xlu0 %2969
        %v2971 = vunpack.c.l.b16 %v2621
        %v2972 = vunpack.c.l.b16 %v2645
        %v2973 = vunpack.c.l.b16 %v2624
        %v2974 = vunpack.c.l.b16 %v2648
        %v2975 = vunpack.c.l.b16 %v2627
        %v2976 = vunpack.c.l.b16 %v2651
        %v2977 = vunpack.c.l.b16 %v2630
        %v2978 = vunpack.c.l.b16 %v2654
        %v2979 = vunpack.c.l.b16 %v2633
        %v2980 = vunpack.c.l.b16 %v2657
        %v2981 = vunpack.c.l.b16 %v2636
        %v2982 = vunpack.c.l.b16 %v2660
        %v2983 = vunpack.c.l.b16 %v2639
        %v2984 = vunpack.c.l.b16 %v2663
        %v2985 = vunpack.c.l.b16 %v2642
        %v2986 = vunpack.c.l.b16 %v2666
        %v2987 = vpack.c.b16 %v2972, %v2971
        %v2988 = vpack.c.b16 %v2974, %v2973
        %v2989 = vpack.c.b16 %v2976, %v2975
        %v2990 = vpack.c.b16 %v2978, %v2977
        %v2991 = vpack.c.b16 %v2980, %v2979
        %v2992 = vpack.c.b16 %v2982, %v2981
        %v2993 = vpack.c.b16 %v2984, %v2983
        %v2994 = vpack.c.b16 %v2986, %v2985
        %2995 = vrot.lane.b32.xlu0 %v2987, 64
        %v2996 = vpop.permute.xlu0 %2995
        %2997 = vrot.lane.b32.xlu0 %v2988, 64
        %v2998 = vpop.permute.xlu0 %2997
        %2999 = vrot.lane.b32.xlu0 %v2989, 64
        %v3000 = vpop.permute.xlu0 %2999
        %3001 = vrot.lane.b32.xlu0 %v2990, 64
        %v3002 = vpop.permute.xlu0 %3001
        %3003 = vrot.lane.b32.xlu0 %v2991, 64
        %v3004 = vpop.permute.xlu0 %3003
        %3005 = vrot.lane.b32.xlu0 %v2992, 64
        %v3006 = vpop.permute.xlu0 %3005
        %3007 = vrot.lane.b32.xlu0 %v2993, 64
        %v3008 = vpop.permute.xlu0 %3007
        %3009 = vrot.lane.b32.xlu0 %v2994, 64
        %v3010 = vpop.permute.xlu0 %3009
        %vm3011 = vcmask 64512
        %v3014 = vsel %vm3011, %v2683, %v2716
        %v3017 = vsel %vm3011, %v2684, %v2718
        %v3020 = vsel %vm3011, %v2685, %v2720
        %v3023 = vsel %vm3011, %v2686, %v2722
        %v3026 = vsel %vm3011, %v2687, %v2724
        %v3029 = vsel %vm3011, %v2688, %v2726
        %v3032 = vsel %vm3011, %v2689, %v2728
        %v3035 = vsel %vm3011, %v2690, %v2730
        %vm3036 = vcmask 130048
        %v3038 = vsel %vm3036, %v3014, %v2756
        %v3040 = vsel %vm3036, %v3017, %v2758
        %v3042 = vsel %vm3036, %v3020, %v2760
        %v3044 = vsel %vm3036, %v3023, %v2762
        %v3046 = vsel %vm3036, %v3026, %v2764
        %v3048 = vsel %vm3036, %v3029, %v2766
        %v3050 = vsel %vm3036, %v3032, %v2768
        %v3052 = vsel %vm3036, %v3035, %v2770
        %vm3053 = vcmask 195584
        %v3055 = vsel %vm3053, %v3038, %v2796
        %v3057 = vsel %vm3053, %v3040, %v2798
        %v3059 = vsel %vm3053, %v3042, %v2800
        %v3061 = vsel %vm3053, %v3044, %v2802
        %v3063 = vsel %vm3053, %v3046, %v2804
        %v3065 = vsel %vm3053, %v3048, %v2806
        %v3067 = vsel %vm3053, %v3050, %v2808
        %v3069 = vsel %vm3053, %v3052, %v2810
        %vm3070 = vcmask 261120
        %v3072 = vsel %vm3070, %v3055, %v2836
        %v3074 = vsel %vm3070, %v3057, %v2838
        %v3076 = vsel %vm3070, %v3059, %v2840
        %v3078 = vsel %vm3070, %v3061, %v2842
        %v3080 = vsel %vm3070, %v3063, %v2844
        %v3082 = vsel %vm3070, %v3065, %v2846
        %v3084 = vsel %vm3070, %v3067, %v2848
        %v3086 = vsel %vm3070, %v3069, %v2850
        %vm3087 = vcmask 326656
        %v3089 = vsel %vm3087, %v3072, %v2876
        %v3091 = vsel %vm3087, %v3074, %v2878
        %v3093 = vsel %vm3087, %v3076, %v2880
        %v3095 = vsel %vm3087, %v3078, %v2882
        %v3097 = vsel %vm3087, %v3080, %v2884
        %v3099 = vsel %vm3087, %v3082, %v2886
        %v3101 = vsel %vm3087, %v3084, %v2888
        %v3103 = vsel %vm3087, %v3086, %v2890
        %vm3104 = vcmask 392192
        %v3106 = vsel %vm3104, %v3089, %v2916
        %v3108 = vsel %vm3104, %v3091, %v2918
        %v3110 = vsel %vm3104, %v3093, %v2920
        %v3112 = vsel %vm3104, %v3095, %v2922
        %v3114 = vsel %vm3104, %v3097, %v2924
        %v3116 = vsel %vm3104, %v3099, %v2926
        %v3118 = vsel %vm3104, %v3101, %v2928
        %v3120 = vsel %vm3104, %v3103, %v2930
        %vm3121 = vcmask 457728
        %v3123 = vsel %vm3121, %v3106, %v2956
        %v3125 = vsel %vm3121, %v3108, %v2958
        %v3127 = vsel %vm3121, %v3110, %v2960
        %v3129 = vsel %vm3121, %v3112, %v2962
        %v3131 = vsel %vm3121, %v3114, %v2964
        %v3133 = vsel %vm3121, %v3116, %v2966
        %v3135 = vsel %vm3121, %v3118, %v2968
        %v3137 = vsel %vm3121, %v3120, %v2970
        %vm3138 = vcmask 523264
        %v3140 = vsel %vm3138, %v3123, %v2996
        %v3142 = vsel %vm3138, %v3125, %v2998
        %v3144 = vsel %vm3138, %v3127, %v3000
        %v3146 = vsel %vm3138, %v3129, %v3002
        %v3148 = vsel %vm3138, %v3131, %v3004
        %v3150 = vsel %vm3138, %v3133, %v3006
        %v3152 = vsel %vm3138, %v3135, %v3008
        %v3154 = vsel %vm3138, %v3137, %v3010
        %v3155 = vld [vmem:[%s1] sm:$0xf]
        %v3156 = vld [vmem:[%s1 + $0x4] sm:$0xf]
        %v3157 = vld [vmem:[%s1 + $0x8] sm:$0xf]
        %v3158 = vld [vmem:[%s1 + $0xc] sm:$0xf]
        %v3159 = vld [vmem:[%s1 + $0x10] sm:$0xf]
        %v3160 = vld [vmem:[%s1 + $0x14] sm:$0xf]
        %v3161 = vld [vmem:[%s1 + $0x18] sm:$0xf]
        %v3162 = vld [vmem:[%s1 + $0x1c] sm:$0xf]
        %v3163 = vld [vmem:[%s1 + $0x20] sm:$0xf]
        %v3164 = vld [vmem:[%s2] sm:$0x1]
        %v3166 = vlaneseq
        %v3167 = vshrl.u32 %v3166, 7
        %v3168 = vsub.s32 0, %v3167
        %v3169 = vrot.slane %v3164, %v3168
        %v3180 = vunpack.c.l.b16 %v3155
        %v3181 = vunpack.c.l.b16 %v3156
        %v3182 = vunpack.c.l.b16 %v3157
        %v3183 = vunpack.c.l.b16 %v3158
        %v3184 = vunpack.c.l.b16 %v3159
        %v3185 = vunpack.c.l.b16 %v3160
        %v3186 = vunpack.c.l.b16 %v3161
        %v3187 = vunpack.c.l.b16 %v3162
        %v3188 = vunpack.c.l.b16 %v3163
        %v3189 = vpack.c.b16 %v3181, %v3180
        %v3190 = vpack.c.b16 %v3183, %v3182
        %v3191 = vpack.c.b16 %v3185, %v3184
        %v3192 = vpack.c.b16 %v3187, %v3186
        %v3193 = vpack.c.b16 %v3188, %v3188
        %vm3198 = vcmask 588800
        %v3199 = vsel %vm3198, %v3140, 0
        %v3201 = vsel %vm3198, %v3142, 0
        %v3203 = vsel %vm3198, %v3144, 0
        %v3205 = vsel %vm3198, %v3146, 0
        %v3207 = vsel %vm3198, %v3148, 0
        %v3209 = vsel %vm3198, %v3150, 0
        %v3211 = vsel %vm3198, %v3152, 0
        %v3213 = vsel %vm3198, %v3154, 0
        %vm3215 = vcmask 1043456
        %v3217 = vsel %vm3215, %v3193, 0
        %3219 = vmatprep.subr.bf16.mxu0 0
        %3220 = vmatpush1.bf16.msra.mxu0 %v3189
        %3221 = vmatprep.subr.bf16.mxu0 0
        %3222 = vmatpush1.bf16.msra.mxu0 %v3190
        %3223 = vmatprep.subr.bf16.mxu0 0
        %3224 = vmatpush1.bf16.msra.mxu0 %v3191
        %3225 = vmatprep.subr.bf16.mxu0 0
        %3226 = vmatpush1.bf16.msra.mxu0 %v3192
        %3227 = vmatprep.subr.bf16.mxu0 0
        %3228 = vmatpush1.bf16.msra.mxu0 %v3217
        %3229 = vmatprep.subr.bf16.mxu0 0
        %3230 = vmatpush1.bf16.msra.mxu0 0
        %3231 = vmatprep.subr.bf16.mxu0 0
        %3232 = vmatpush1.bf16.msra.mxu0 0
        %3233 = vmatprep.subr.bf16.mxu0 0
        %3234 = vmatpush1.bf16.msra.mxu0 0
        %3235 = vmatprep.subr.bf16.mxu0 0
        %3236 = vmatpush1.bf16.msra.mxu0 0
        %3237 = vmatprep.subr.bf16.mxu0 0
        %3238 = vmatpush1.bf16.msra.mxu0 0
        %3239 = vmatprep.subr.bf16.mxu0 0
        %3240 = vmatpush1.bf16.msra.mxu0 0
        %3241 = vmatprep.subr.bf16.mxu0 0
        %3242 = vmatpush1.bf16.msra.mxu0 0
        %3243 = vmatprep.subr.bf16.mxu0 0
        %3244 = vmatpush1.bf16.msra.mxu0 0
        %3245 = vmatprep.subr.bf16.mxu0 0
        %3246 = vmatpush1.bf16.msra.mxu0 0
        %3247 = vmatprep.subr.bf16.mxu0 0
        %3248 = vmatpush1.bf16.msra.mxu0 0
        %3249 = vmatprep.subr.bf16.mxu0 0
        %3250 = vmatpush1.bf16.msra.mxu0 0
        %3251 = vmatprep.mubr.bf16.mxu0 0
        %3252 = vmatmul.mubr.bf16.gmra.mrb[0].mxu0 %v3199
        %v3253 = vpop.f32.mrb[0].mxu0
        %v3254 = vadd.f32 %v3169, %v3253
        %v3255 = vpop.f32.mrb[0].mxu0
        %v3256 = vpop.f32.mrb[0].mxu0
        %v3257 = vadd.f32 %v3169, %v3256
        %v3258 = vpop.f32.mrb[0].mxu0
        %3259 = vmatprep.mubr.bf16.mxu0 0
        %3260 = vmatmul.mubr.bf16.gmra.mrb[0].mxu0 %v3201
        %v3261 = vpop.f32.mrb[0].mxu0
        %v3262 = vadd.f32 %v3169, %v3261
        %v3263 = vpop.f32.mrb[0].mxu0
        %v3264 = vpop.f32.mrb[0].mxu0
        %v3265 = vadd.f32 %v3169, %v3264
        %v3266 = vpop.f32.mrb[0].mxu0
        %3267 = vmatprep.mubr.bf16.mxu0 0
        %3268 = vmatmul.mubr.bf16.gmra.mrb[0].mxu0 %v3203
        %v3269 = vpop.f32.mrb[0].mxu0
        %v3270 = vadd.f32 %v3169, %v3269
        %v3271 = vpop.f32.mrb[0].mxu0
        %v3272 = vpop.f32.mrb[0].mxu0
        %v3273 = vadd.f32 %v3169, %v3272
        %v3274 = vpop.f32.mrb[0].mxu0
        %3275 = vmatprep.mubr.bf16.mxu0 0
        %3276 = vmatmul.mubr.bf16.gmra.mrb[0].mxu0 %v3205
        %v3277 = vpop.f32.mrb[0].mxu0
        %v3278 = vadd.f32 %v3169, %v3277
        %v3279 = vpop.f32.mrb[0].mxu0
        %v3280 = vpop.f32.mrb[0].mxu0
        %v3281 = vadd.f32 %v3169, %v3280
        %v3282 = vpop.f32.mrb[0].mxu0
        %3283 = vmatprep.mubr.bf16.mxu0 0
        %3284 = vmatmul.mubr.bf16.gmra.mrb[0].mxu0 %v3207
        %v3285 = vpop.f32.mrb[0].mxu0
        %v3286 = vadd.f32 %v3169, %v3285
        %v3287 = vpop.f32.mrb[0].mxu0
        %v3288 = vpop.f32.mrb[0].mxu0
        %v3289 = vadd.f32 %v3169, %v3288
        %v3290 = vpop.f32.mrb[0].mxu0
        %3291 = vmatprep.mubr.bf16.mxu0 0
        %3292 = vmatmul.mubr.bf16.gmra.mrb[0].mxu0 %v3209
        %v3293 = vpop.f32.mrb[0].mxu0
        %v3294 = vadd.f32 %v3169, %v3293
        %v3295 = vpop.f32.mrb[0].mxu0
        %v3296 = vpop.f32.mrb[0].mxu0
        %v3297 = vadd.f32 %v3169, %v3296
        %v3298 = vpop.f32.mrb[0].mxu0
        %3299 = vmatprep.mubr.bf16.mxu0 0
        %3300 = vmatmul.mubr.bf16.gmra.mrb[0].mxu0 %v3211
        %v3301 = vpop.f32.mrb[0].mxu0
        %v3302 = vadd.f32 %v3169, %v3301
        %v3303 = vpop.f32.mrb[0].mxu0
        %v3304 = vpop.f32.mrb[0].mxu0
        %v3305 = vadd.f32 %v3169, %v3304
        %v3306 = vpop.f32.mrb[0].mxu0
        %3307 = vmatprep.mubr.bf16.mxu0 0
        %3308 = vmatmul.mubr.bf16.gmra.mrb[0].mxu0 %v3213
        %v3309 = vpop.f32.mrb[0].mxu0
        %v3310 = vadd.f32 %v3169, %v3309
        %v3311 = vpop.f32.mrb[0].mxu0
        %v3312 = vpop.f32.mrb[0].mxu0
        %v3313 = vadd.f32 %v3169, %v3312
        %v3314 = vpop.f32.mrb[0].mxu0
        %3315 = vdwg.mxu0
        %v3316 = vmax.f32 %v3254, 0.0
        %v3317 = vmax.f32 %v3257, 0.0
        %v3318 = vmax.f32 %v3262, 0.0
        %v3319 = vmax.f32 %v3265, 0.0
        %v3320 = vmax.f32 %v3270, 0.0
        %v3321 = vmax.f32 %v3273, 0.0
        %v3322 = vmax.f32 %v3278, 0.0
        %v3323 = vmax.f32 %v3281, 0.0
        %v3324 = vmax.f32 %v3286, 0.0
        %v3325 = vmax.f32 %v3289, 0.0
        %v3326 = vmax.f32 %v3294, 0.0
        %v3327 = vmax.f32 %v3297, 0.0
        %v3328 = vmax.f32 %v3302, 0.0
        %v3329 = vmax.f32 %v3305, 0.0
        %v3330 = vmax.f32 %v3310, 0.0
        %v3331 = vmax.f32 %v3313, 0.0
        %v3332 = vld [vmem:[#allocation2] sm:$0x1]
        %v3333 = vadd.f32 %v3316, %v3317
        %v3334 = vadd.f32 %v3333, %v3318
        %v3335 = vadd.f32 %v3334, %v3319
        %v3336 = vadd.f32 %v3335, %v3320
        %v3337 = vadd.f32 %v3336, %v3321
        %v3338 = vadd.f32 %v3337, %v3322
        %v3339 = vadd.f32 %v3338, %v3323
        %v3340 = vadd.f32 %v3339, %v3324
        %v3341 = vadd.f32 %v3340, %v3325
        %v3342 = vadd.f32 %v3341, %v3326
        %v3343 = vadd.f32 %v3342, %v3327
        %v3344 = vadd.f32 %v3343, %v3328
        %v3345 = vadd.f32 %v3344, %v3329
        %v3346 = vadd.f32 %v3345, %v3330
        %v3347 = vadd.f32 %v3346, %v3331
        %v3348 = vrot.slane %v3347, 4
        %v3349 = vadd.f32 %v3347, %v3348
        %v3350 = vrot.slane %v3349, 2
        %v3351 = vadd.f32 %v3349, %v3350
        %v3352 = vrot.slane %v3351, 1
        %v3353 = vadd.f32 %v3351, %v3352
        %v3354 = vadd.f32 %v3332, %v3353
        %3355 = vst [vmem:[#allocation2] sm:$0x1] %v3354
        %p3356 = scmp.eq.s32.totalorder %s24, 1
        // Predicated region
        $region45: #{torchvision_model_forward.1} parent=39 // pred_check
          %p3357 = pneg %p3356
        $region46: #{torchvision_model_forward.1} parent=39 // pred_check_branch
          %3359 = sbr.rel (%p3357) target = $region48
        $region47: #{torchvision_model_forward.1} parent=39 // pred_region
          %v3360 = vld [vmem:[#allocation2] sm:$0x1]
          %v3361 = vmul.f32 %v3360, 0.00390625
          %v3362 = vld [vmem:[%s3] sm:$0xff]
          %v3363 = vld [vmem:[%s3 + $0x8] sm:$0xff]
          %v3364 = vld [vmem:[%s3 + $0x10] sm:$0xff]
          %v3365 = vld [vmem:[%s3 + $0x18] sm:$0xff]
          %v3366 = vld [vmem:[%s3 + $0x20] sm:$0xff]
          %v3367 = vld [vmem:[%s3 + $0x28] sm:$0xff]
          %v3368 = vld [vmem:[%s3 + $0x30] sm:$0xff]
          %v3369 = vld [vmem:[%s3 + $0x38] sm:$0xff]
          %v3370 = vld [vmem:[%s3 + $0x40] sm:$0xff]
          %v3371 = vld [vmem:[%s3 + $0x48] sm:$0xff]
          %v3372 = vld [vmem:[%s3 + $0x50] sm:$0xff]
          %v3373 = vld [vmem:[%s3 + $0x58] sm:$0xff]
          %v3374 = vld [vmem:[%s3 + $0x60] sm:$0xff]
          %v3375 = vld [vmem:[%s3 + $0x68] sm:$0xff]
          %v3376 = vld [vmem:[%s3 + $0x70] sm:$0xff]
          %v3377 = vld [vmem:[%s3 + $0x78] sm:$0xff]
          %v3378 = vld [vmem:[%s4] sm:$0x1]
          %3379 = vmatprep.subr.mxu0 0.0
          %3380 = vmatpush1.msra.mxu0 %v3362
          %3381 = vmatprep.subr.mxu0 0.0
          %3382 = vmatpush1.msra.mxu0 %v3363
          %3383 = vmatprep.subr.mxu0 0.0
          %3384 = vmatpush1.msra.mxu0 %v3364
          %3385 = vmatprep.subr.mxu0 0.0
          %3386 = vmatpush1.msra.mxu0 %v3365
          %3387 = vmatprep.subr.mxu0 0.0
          %3388 = vmatpush1.msra.mxu0 %v3366
          %3389 = vmatprep.subr.mxu0 0.0
          %3390 = vmatpush1.msra.mxu0 %v3367
          %3391 = vmatprep.subr.mxu0 0.0
          %3392 = vmatpush1.msra.mxu0 %v3368
          %3393 = vmatprep.subr.mxu0 0.0
          %3394 = vmatpush1.msra.mxu0 %v3369
          %3395 = vmatprep.subr.mxu0 0.0
          %3396 = vmatpush1.msra.mxu0 %v3370
          %3397 = vmatprep.subr.mxu0 0.0
          %3398 = vmatpush1.msra.mxu0 %v3371
          %3399 = vmatprep.subr.mxu0 0.0
          %3400 = vmatpush1.msra.mxu0 %v3372
          %3401 = vmatprep.subr.mxu0 0.0
          %3402 = vmatpush1.msra.mxu0 %v3373
          %3403 = vmatprep.subr.mxu0 0.0
          %3404 = vmatpush1.msra.mxu0 %v3374
          %3405 = vmatprep.subr.mxu0 0.0
          %3406 = vmatpush1.msra.mxu0 %v3375
          %3407 = vmatprep.subr.mxu0 0.0
          %3408 = vmatpush1.msra.mxu0 %v3376
          %3409 = vmatprep.subr.mxu0 0.0
          %3410 = vmatpush1.msra.mxu0 %v3377
          %3411 = vmatprep.subr.mxu0 0.0
          %3412 = vmatpush1.msra.mxu0 0.0
          %3413 = vmatprep.subr.mxu0 0.0
          %3414 = vmatpush1.msra.mxu0 0.0
          %3415 = vmatprep.subr.mxu0 0.0
          %3416 = vmatpush1.msra.mxu0 0.0
          %3417 = vmatprep.subr.mxu0 0.0
          %3418 = vmatpush1.msra.mxu0 0.0
          %3419 = vmatprep.subr.mxu0 0.0
          %3420 = vmatpush1.msra.mxu0 0.0
          %3421 = vmatprep.subr.mxu0 0.0
          %3422 = vmatpush1.msra.mxu0 0.0
          %3423 = vmatprep.subr.mxu0 0.0
          %3424 = vmatpush1.msra.mxu0 0.0
          %3425 = vmatprep.subr.mxu0 0.0
          %3426 = vmatpush1.msra.mxu0 0.0
          %3427 = vmatprep.subr.mxu0 0.0
          %3428 = vmatpush1.msra.mxu0 0.0
          %3429 = vmatprep.subr.mxu0 0.0
          %3430 = vmatpush1.msra.mxu0 0.0
          %3431 = vmatprep.subr.mxu0 0.0
          %3432 = vmatpush1.msra.mxu0 0.0
          %3433 = vmatprep.subr.mxu0 0.0
          %3434 = vmatpush1.msra.mxu0 0.0
          %3435 = vmatprep.subr.mxu0 0.0
          %3436 = vmatpush1.msra.mxu0 0.0
          %3437 = vmatprep.subr.mxu0 0.0
          %3438 = vmatpush1.msra.mxu0 0.0
          %3439 = vmatprep.subr.mxu0 0.0
          %3440 = vmatpush1.msra.mxu0 0.0
          %3441 = vmatprep.subr.mxu0 0.0
          %3442 = vmatpush1.msra.mxu0 0.0
          %3443 = vmatprep.mubr.f32.mxu0 0.0
          %3444 = vmatmul.mubr.f32.gmra.mrb[0].mxu0 %v3361
          %v3445 = vpop.f32.mrb[0].mxu0
          %v3446 = vadd.f32 %v3378, %v3445
          %v3447 = vpop.f32.mrb[0].mxu0
          %3448 = vdwg.mxu0
          %3449 = vst [vmem:[%s238] sm:$0x1] %v3446
        $region48: #{torchvision_model_forward.1} parent=39 // pred_fallthru
          _
        %s3450 = sand.u32 %s151, 1
        %s3451 = scalar_lea.sflag [#allocation4], %s3450
        %s3452 = sand.u32 %s151, 1
        %s3453 = scalar_lea.vmem [#allocation3], %s3452
        // Predicated region
        $region49: #{torchvision_model_forward.1} parent=39 // pred_check
          %p3454 = pneg %p161
        $region50: #{torchvision_model_forward.1} parent=39 // pred_check_branch
          %3456 = sbr.rel (%p3454) target = $region52
        $region51: #{torchvision_model_forward.1} parent=39 // pred_region
          %s3458 = ssub.s32 16, 16
          %3459 = vsyncadd %s3451, %s3458
          %s3460 = smul.addr %s23, 16
          %s3461 = scalar_lea.hbm %s5, %s3460
          %s3463 = sshll.u32 %s3453, 4
          %s3464 = int_to_ptr.vmem [resolvable:$true] %s3463
          %3466 = dma.vmem_to_hbm [thread:$0]  %s3464, 16, %s3461, %s3451
        $region52: #{torchvision_model_forward.1} parent=39 // pred_fallthru
          _
      $region40: #{torchvision_model_forward.1} parent=5 // pred_fallthru
        _
      %p3467 = scmp.le.s32.totalorder 2, %s14
      // Predicated region
      $region53: #{torchvision_model_forward.1} parent=5 // pred_check
        %p3468 = pneg %p3467
      $region54: #{torchvision_model_forward.1} parent=5 // pred_check_branch
        %3470 = sbr.rel (%p3468) target = $region56
      $region55: #{torchvision_model_forward.1} parent=5 // pred_region
        %s3471 = ssub.s32 %s14, 2
        // Predicated region
        $region57: #{torchvision_model_forward.1} parent=55 // pred_check
          %p3472 = pneg %p167
        $region58: #{torchvision_model_forward.1} parent=55 // pred_check_branch
          %3474 = sbr.rel (%p3472) target = $region60
        $region59: #{torchvision_model_forward.1} parent=55 // pred_region
          %s3475 = sand.u32 %s152, 1
          %s3476 = scalar_lea.sflag [#allocation4], %s3475
          %s3477 = sand.u32 %s152, 1
          %s3478 = scalar_lea.vmem [#allocation3], %s3477
          %3479 = dma.done %s3476, 16
        $region60: #{torchvision_model_forward.1} parent=55 // pred_fallthru
          _
      $region56: #{torchvision_model_forward.1} parent=5 // pred_fallthru
        _
    $region6: #{torchvision_model_forward.1} parent=1 // loop_footer
      %s18 = sadd.s32 1, %s14
    $region7: #{torchvision_model_forward.1} parent=1 // loop_footer_branch
      %13 = sbr.rel target = $region3
    $region8: #{torchvision_model_forward.1} parent=1 // loop_exit
      _
    %3480 = vsyncpa [#allocation4], 1
    %s3481 = scalar_lea.sflag [#allocation4], 1
    %3482 = vsyncpa %s3481, 1

</llo_original>
